<compile_context>
chip_gen: v6e
topology: v6e:2x2x1
jax: 0.10.0
libtpu: 0.0.40
codegen_flags: <defaults>
</compile_context>

<pallas_src>
import functools

import jax
import jax.numpy as jnp
from jax.experimental import pallas as pl
from jax.experimental.pallas import tpu as pltpu


def _round_up(x, m):
    return (x + m - 1) // m * m


def _pad_gates_T(w, H, Hp):
    """(4H, d_in) PyTorch-layout weight -> transposed, per-gate lane-padded (d_in, 4*Hp)."""
    d_in = w.shape[1]
    w4 = w.reshape(4, H, d_in)                        # PyTorch gate order: i, f, g, o
    w4 = jnp.pad(w4, ((0, 0), (0, Hp - H), (0, 0)))
    return jnp.transpose(w4, (2, 0, 1)).reshape(d_in, 4 * Hp)


def _make_lstm_kernel(T, Bt, Hp, num_layers, unroll):
    G = 4 * Hp

    def kernel(xp0_ref, wih_ref, whh_ref, b_ref, out_ref, hseq, gx, h_s, c_s):
        l = pl.program_id(1)

        # ---- input projection for this layer: ONE matmul over all T timesteps ----
        @pl.when(l == 0)
        def _():
            gx[...] = xp0_ref[...]                    # layer-0 proj + bias precomputed in XLA

        if num_layers > 1:
            bias = b_ref[...]                         # (1, G) f32, only needed for l > 0

            @pl.when(l > 0)
            def _():
                hs_flat = hseq[...].reshape(T * Bt, Hp).astype(jnp.bfloat16)
                proj = jnp.dot(hs_flat, wih_ref[...],
                               preferred_element_type=jnp.float32) + bias
                gx[...] = proj.reshape(T, Bt, G)

        h_s[...] = jnp.zeros_like(h_s)                # PyTorch zero-initial h0/c0 per layer
        c_s[...] = jnp.zeros_like(c_s)
        whh = whh_ref[...]                            # (Hp, G) bf16, hoisted out of the loop

        # ---- sequential recurrence: only h_prev @ W_hh is left per timestep ----
        @pl.loop(0, T, unroll=unroll)
        def _(t):
            h_prev = h_s[...]
            c_prev = c_s[...]
            gates = gx[t] + jnp.dot(h_prev.astype(jnp.bfloat16), whh,
                                    preferred_element_type=jnp.float32)   # (Bt, G) f32
            # gate slices are lane-tile aligned because each gate is padded to Hp (mult of 128)
            i_g = jax.nn.sigmoid(gates[:, 0 * Hp:1 * Hp])
            f_g = jax.nn.sigmoid(gates[:, 1 * Hp:2 * Hp])
            g_g = jnp.tanh(gates[:, 2 * Hp:3 * Hp])
            o_g = jax.nn.sigmoid(gates[:, 3 * Hp:4 * Hp])
            c_new = f_g * c_prev + i_g * g_g
            h_new = o_g * jnp.tanh(c_new)
            h_s[...] = h_new
            c_s[...] = c_new
            hseq[t] = h_new                           # feeds the next layer's projection

        @pl.when(l == num_layers - 1)
        def _():
            out_ref[...] = h_s[...].astype(out_ref.dtype)

    return kernel


def lstm_model_forward(x_btd, params, *, hidden_size, num_layers, output_size):
    """Forward matching the PyTorch LSTMModel: x (B, T, D) batch_first -> (B, output_size)."""
    B, T, D = x_btd.shape
    H = hidden_size
    Hp = _round_up(H, 128)                   # pad each gate to whole lane tiles
    Bp = _round_up(B, 8)                     # pad batch to whole sublane tiles
    G = 4 * Hp
    Bt = Bp                                  # one batch block here; bigger batches would use
                                             # several blocks -> 'parallel' axis feeds 2nd TC on v7x
    layers = params["layers"]

    # ---- per-layer fused biases, gate-padded (pad entries stay exactly 0) ----
    b_list = [jnp.pad(layers[li][2].reshape(4, H), ((0, 0), (0, Hp - H)))
              .reshape(1, G).astype(jnp.float32) for li in range(num_layers)]
    b_stack = jnp.stack(b_list)                                   # (L, 1, G) f32

    # ---- layer-0 input projection (+ bias) hoisted out of the recurrence ----
    x_tb = jnp.transpose(x_btd, (1, 0, 2))                        # (T, B, D) time-major
    x_tb = jnp.pad(x_tb, ((0, 0), (0, Bp - B), (0, 0)))
    wih0T = _pad_gates_T(layers[0][0], H, Hp)                     # (D, G) bf16
    xp0 = jnp.dot(x_tb.reshape(T * Bp, D).astype(jnp.bfloat16), wih0T,
                  preferred_element_type=jnp.float32).reshape(T, Bp, G) + b_list[0]

    # ---- pack per-layer recurrent weights (zero padding keeps pad lanes inert) ----
    wih_list = [jnp.zeros((Hp, G), jnp.bfloat16)]                 # slot 0 unused (hoisted)
    whh_list = []
    for li in range(num_layers):
        w_ih, w_hh, _ = layers[li]
        whh_list.append(jnp.pad(_pad_gates_T(w_hh, H, Hp), ((0, Hp - H), (0, 0))))
        if li > 0:
            wih_list.append(jnp.pad(_pad_gates_T(w_ih, H, Hp), ((0, Hp - H), (0, 0))))
    wih_stack = jnp.stack(wih_list)                               # (L, Hp, G) bf16
    whh_stack = jnp.stack(whh_list)                               # (L, Hp, G) bf16

    # ---- explicit VMEM budget: double-buffered pipeline blocks + scratch, 2x headroom ----
    blk = T * Bt * G * 4 + 2 * (Hp * G * 2) + 8 * G * 4 + Bt * Hp * 4
    scratch = T * Bt * Hp * 4 + T * Bt * G * 4 + 2 * Bt * Hp * 4
    vmem_limit = int(min(100 << 20, max(8 << 20, 2 * (2 * blk + scratch))))

    kernel = _make_lstm_kernel(T, Bt, Hp, num_layers, unroll=(T <= 32))

    h_last = pl.pallas_call(
        kernel,
        out_shape=jax.ShapeDtypeStruct((Bp, Hp), jnp.float32),
        grid_spec=pltpu.PrefetchScalarGridSpec(
            num_scalar_prefetch=0,
            grid=(Bp // Bt, num_layers),
            in_specs=[
                pl.BlockSpec((T, Bt, G), lambda b, l: (0, b, 0)),              # layer-0 gates
                pl.BlockSpec((pl.Squeezed(), Hp, G), lambda b, l: (l, 0, 0)),  # W_ih (l>0)
                pl.BlockSpec((pl.Squeezed(), Hp, G), lambda b, l: (l, 0, 0)),  # W_hh
                pl.BlockSpec((pl.Squeezed(), 1, G), lambda b, l: (l, 0, 0)),   # bias
            ],
            out_specs=pl.BlockSpec((Bt, Hp), lambda b, l: (b, 0)),
            scratch_shapes=[
                pltpu.VMEM((T, Bt, Hp), jnp.float32),   # current layer's output sequence
                pltpu.VMEM((T, Bt, G), jnp.float32),    # precomputed input-projection gates
                pltpu.VMEM((Bt, Hp), jnp.float32),      # h state
                pltpu.VMEM((Bt, Hp), jnp.float32),      # c state
            ],
        ),
        compiler_params=pltpu.CompilerParams(
            dimension_semantics=("parallel", "arbitrary"),
            vmem_limit_bytes=vmem_limit),
    )(xp0, wih_stack, whh_stack, b_stack)

    # tiny (B,H) x (H,O) projection stays in XLA: frees VMEM, avoids masked O<128 stores
    h_last = h_last[:B, :H]
    return jnp.dot(h_last, params["fc_w"].T,
                   preferred_element_type=jnp.float32) + params["fc_b"]


def init_params(key, input_size, hidden_size, output_size, num_layers,
                weight_dtype=jnp.bfloat16):
    """PyTorch-style uniform(-1/sqrt(H), 1/sqrt(H)) init; LSTM matmul weights in bf16."""
    H = hidden_size
    bound = 1.0 / float(H) ** 0.5
    keys = jax.random.split(key, 4 * num_layers + 2)
    layers = []
    for l in range(num_layers):
        d_in = input_size if l == 0 else H
        k_wih, k_whh, k_bih, k_bhh = keys[4 * l:4 * l + 4]
        w_ih = jax.random.uniform(k_wih, (4 * H, d_in), jnp.float32, -bound, bound)
        w_hh = jax.random.uniform(k_whh, (4 * H, H), jnp.float32, -bound, bound)
        b_ih = jax.random.uniform(k_bih, (4 * H,), jnp.float32, -bound, bound)
        b_hh = jax.random.uniform(k_bhh, (4 * H,), jnp.float32, -bound, bound)
        layers.append((w_ih.astype(weight_dtype), w_hh.astype(weight_dtype),
                       (b_ih + b_hh)))                            # fused bias kept in f32
    fc_w = jax.random.uniform(keys[-2], (output_size, H), jnp.float32, -bound, bound)
    fc_b = jax.random.uniform(keys[-1], (output_size,), jnp.float32, -bound, bound)
    return {"layers": layers, "fc_w": fc_w, "fc_b": fc_b}


def lstm_model_reference(x_btd, params, *, hidden_size, num_layers, output_size):
    """Pure-JAX reference (same dtype flow: bf16 matmul operands, f32 accumulation/state)."""
    B, T, D = x_btd.shape
    H = hidden_size
    seq = jnp.transpose(x_btd, (1, 0, 2)).astype(jnp.float32)     # (T, B, d_in)
    for (w_ih, w_hh, b) in params["layers"]:
        wihT, whhT = w_ih.T, w_hh.T

        def step(carry, x_t, wihT=wihT, whhT=whhT, b=b):
            h, c = carry
            gates = (jnp.dot(x_t.astype(jnp.bfloat16), wihT,
                             preferred_element_type=jnp.float32)
                     + jnp.dot(h.astype(jnp.bfloat16), whhT,
                               preferred_element_type=jnp.float32)
                     + b)
            i = jax.nn.sigmoid(gates[:, 0 * H:1 * H])
            f = jax.nn.sigmoid(gates[:, 1 * H:2 * H])
            g = jnp.tanh(gates[:, 2 * H:3 * H])
            o = jax.nn.sigmoid(gates[:, 3 * H:4 * H])
            c = f * c + i * g
            h = o * jnp.tanh(c)
            return (h, c), h

        init = (jnp.zeros((B, H), jnp.float32), jnp.zeros((B, H), jnp.float32))
        _, seq = jax.lax.scan(step, init, seq)
    return jnp.dot(seq[-1], params["fc_w"].T,
                   preferred_element_type=jnp.float32) + params["fc_b"]


if __name__ == "__main__":
    B, T = 2, 8
    INPUT_SIZE, HIDDEN_SIZE, OUTPUT_SIZE, NUM_LAYERS = 16, 32, 8, 2

    key = jax.random.PRNGKey(0)
    k_x, k_p = jax.random.split(key)
    x = jax.random.normal(k_x, (B, T, INPUT_SIZE), jnp.float32)
    params = init_params(k_p, INPUT_SIZE, HIDDEN_SIZE, OUTPUT_SIZE, NUM_LAYERS)

    fwd = jax.jit(functools.partial(lstm_model_forward,
                                    hidden_size=HIDDEN_SIZE,
                                    num_layers=NUM_LAYERS,
                                    output_size=OUTPUT_SIZE))
    out = jax.block_until_ready(fwd(x, params))

    ref = lstm_model_reference(x, params, hidden_size=HIDDEN_SIZE,
                               num_layers=NUM_LAYERS, output_size=OUTPUT_SIZE)
    assert out.shape == (B, OUTPUT_SIZE)
    # bf16 matmul operands on both paths -> loosened tolerance vs the all-f32 original
    assert jnp.allclose(out, ref, atol=3e-2, rtol=3e-2), "mismatch vs JAX reference"
    print("KERNEL_OK")
</pallas_src>

<mosaic_0001>
module attributes {stable_mosaic.version = 11 : i64} {
  func.func @kernel(%arg0: i32, %arg1: i32, %arg2: memref<8x8x512xf32, #tpu.memory_space<vmem>>, %arg3: memref<1x128x512xbf16, #tpu.memory_space<vmem>>, %arg4: memref<1x128x512xbf16, #tpu.memory_space<vmem>>, %arg5: memref<1x1x512xf32, #tpu.memory_space<vmem>>, %arg6: memref<8x128xf32, #tpu.memory_space<vmem>>, %arg7: memref<8x8x128xf32, #tpu.memory_space<vmem>>, %arg8: memref<8x8x512xf32, #tpu.memory_space<vmem>>, %arg9: memref<8x128xf32, #tpu.memory_space<vmem>>, %arg10: memref<8x128xf32, #tpu.memory_space<vmem>>) attributes {dimension_semantics = [#tpu.dimension_semantics<parallel>, #tpu.dimension_semantics<arbitrary>], iteration_bounds = array<i64: 1, 2>, scalar_prefetch = 0 : i64, scratch_operands = 4 : i64, tpu.core_type = #tpu.core_type<tc>, window_params = [{transform_indices = @transform_0, window_bounds = array<i64: 8, 8, 512>}, {transform_indices = @transform_1, window_bounds = array<i64: 1, 128, 512>}, {transform_indices = @transform_2, window_bounds = array<i64: 1, 128, 512>}, {transform_indices = @transform_3, window_bounds = array<i64: 1, 1, 512>}, {transform_indices = @transform_4, window_bounds = array<i64: 8, 128>}]} {
    %c0_i32 = arith.constant 0 : i32
    %0 = arith.cmpi eq, %arg1, %c0_i32 : i32
    %1 = arith.extui %0 : i1 to i32
    %c0_i32_0 = arith.constant 0 : i32
    %2 = arith.cmpi ne, %1, %c0_i32_0 : i32
    scf.if %2 {
      %c0_160 = arith.constant 0 : index
      %c0_161 = arith.constant 0 : index
      %c0_162 = arith.constant 0 : index
      %345 = vector.load %arg2[%c0_160, %c0_161, %c0_162] : memref<8x8x512xf32, #tpu.memory_space<vmem>>, vector<8x8x512xf32>
      %c0_163 = arith.constant 0 : index
      %c0_164 = arith.constant 0 : index
      %c0_165 = arith.constant 0 : index
      %346 = vector.load %arg8[%c0_163, %c0_164, %c0_165] : memref<8x8x512xf32, #tpu.memory_space<vmem>>, vector<8x8x512xf32>
      tpu.vector_store %arg8[%c0_163, %c0_164, %c0_165], %345 {strides = array<i32>} : memref<8x8x512xf32, #tpu.memory_space<vmem>>, vector<8x8x512xf32>,
    } else {
    }
    %c0 = arith.constant 0 : index
    %c0_1 = arith.constant 0 : index
    %c0_2 = arith.constant 0 : index
    %3 = vector.load %arg5[%c0, %c0_1, %c0_2] : memref<1x1x512xf32, #tpu.memory_space<vmem>>, vector<1x1x512xf32>
    %4 = vector.shape_cast %3 : vector<1x1x512xf32> to vector<1x512xf32>
    %c0_i32_3 = arith.constant 0 : i32
    %5 = arith.cmpi sgt, %arg1, %c0_i32_3 : i32
    %6 = arith.extui %5 : i1 to i32
    %c0_i32_4 = arith.constant 0 : i32
    %7 = arith.cmpi ne, %6, %c0_i32_4 : i32
    scf.if %7 {
      %c0_160 = arith.constant 0 : index
      %c0_161 = arith.constant 0 : index
      %c0_162 = arith.constant 0 : index
      %345 = vector.load %arg7[%c0_160, %c0_161, %c0_162] : memref<8x8x128xf32, #tpu.memory_space<vmem>>, vector<8x8x128xf32>
      %346 = vector.shape_cast %345 : vector<8x8x128xf32> to vector<64x128xf32>
      %347 = arith.truncf %346 : vector<64x128xf32> to vector<64x128xbf16>
      %c0_163 = arith.constant 0 : index
      %c0_164 = arith.constant 0 : index
      %c0_165 = arith.constant 0 : index
      %348 = vector.load %arg3[%c0_163, %c0_164, %c0_165] : memref<1x128x512xbf16, #tpu.memory_space<vmem>>, vector<1x128x512xbf16>
      %349 = vector.shape_cast %348 : vector<1x128x512xbf16> to vector<128x512xbf16>
      %cst_166 = arith.constant dense<0.000000e+00> : vector<64x512xf32>
      %350 = tpu.matmul %347, %349, %cst_166 {dimension_numbers = #tpu.dot_dimension_numbers<[1], [0], [0], [1], [0, 0, 1, 1], [], []>} : vector<64x128xbf16>, vector<128x512xbf16>, vector<64x512xf32> -> vector<64x512xf32>
      %351 = vector.broadcast %4 : vector<1x512xf32> to vector<64x512xf32>
      %352 = arith.addf %350, %351 : vector<64x512xf32>
      %353 = vector.shape_cast %352 : vector<64x512xf32> to vector<8x8x512xf32>
      %c0_167 = arith.constant 0 : index
      %c0_168 = arith.constant 0 : index
      %c0_169 = arith.constant 0 : index
      %354 = vector.load %arg8[%c0_167, %c0_168, %c0_169] : memref<8x8x512xf32, #tpu.memory_space<vmem>>, vector<8x8x512xf32>
      tpu.vector_store %arg8[%c0_167, %c0_168, %c0_169], %353 {strides = array<i32>} : memref<8x8x512xf32, #tpu.memory_space<vmem>>, vector<8x8x512xf32>,
    } else {
    }
    %cst = arith.constant 0.000000e+00 : f32
    %8 = vector.broadcast %cst : f32 to vector<8x128xf32>
    %c0_5 = arith.constant 0 : index
    %c0_6 = arith.constant 0 : index
    %9 = vector.load %arg9[%c0_5, %c0_6] : memref<8x128xf32, #tpu.memory_space<vmem>>, vector<8x128xf32>
    tpu.vector_store %arg9[%c0_5, %c0_6], %8 {strides = array<i32>} : memref<8x128xf32, #tpu.memory_space<vmem>>, vector<8x128xf32>,
    %cst_7 = arith.constant 0.000000e+00 : f32
    %10 = vector.broadcast %cst_7 : f32 to vector<8x128xf32>
    %c0_8 = arith.constant 0 : index
    %c0_9 = arith.constant 0 : index
    %11 = vector.load %arg10[%c0_8, %c0_9] : memref<8x128xf32, #tpu.memory_space<vmem>>, vector<8x128xf32>
    tpu.vector_store %arg10[%c0_8, %c0_9], %10 {strides = array<i32>} : memref<8x128xf32, #tpu.memory_space<vmem>>, vector<8x128xf32>,
    %c0_10 = arith.constant 0 : index
    %c0_11 = arith.constant 0 : index
    %c0_12 = arith.constant 0 : index
    %12 = vector.load %arg4[%c0_10, %c0_11, %c0_12] : memref<1x128x512xbf16, #tpu.memory_space<vmem>>, vector<1x128x512xbf16>
    %13 = vector.shape_cast %12 : vector<1x128x512xbf16> to vector<128x512xbf16>
    %c0_i32_13 = arith.constant 0 : i32
    %c1_i32 = arith.constant 1 : i32
    %14 = arith.muli %c0_i32_13, %c1_i32 : i32
    %c0_i32_14 = arith.constant 0 : i32
    %15 = arith.addi %c0_i32_14, %14 : i32
    %c0_15 = arith.constant 0 : index
    %c0_16 = arith.constant 0 : index
    %16 = vector.load %arg9[%c0_15, %c0_16] : memref<8x128xf32, #tpu.memory_space<vmem>>, vector<8x128xf32>
    %c0_17 = arith.constant 0 : index
    %c0_18 = arith.constant 0 : index
    %17 = vector.load %arg10[%c0_17, %c0_18] : memref<8x128xf32, #tpu.memory_space<vmem>>, vector<8x128xf32>
    %18 = arith.index_cast %15 : i32 to index
    %c0_19 = arith.constant 0 : index
    %c0_20 = arith.constant 0 : index
    %19 = vector.load %arg8[%18, %c0_19, %c0_20] : memref<8x8x512xf32, #tpu.memory_space<vmem>>, vector<1x8x512xf32>
    %20 = vector.shape_cast %19 : vector<1x8x512xf32> to vector<8x512xf32>
    %21 = arith.truncf %16 : vector<8x128xf32> to vector<8x128xbf16>
    %cst_21 = arith.constant dense<0.000000e+00> : vector<8x512xf32>
    %22 = tpu.matmul %21, %13, %cst_21 {dimension_numbers = #tpu.dot_dimension_numbers<[1], [0], [0], [1], [0, 0, 1, 1], [], []>} : vector<8x128xbf16>, vector<128x512xbf16>, vector<8x512xf32> -> vector<8x512xf32>
    %23 = arith.addf %20, %22 : vector<8x512xf32>
    %24 = vector.extract_strided_slice %23 {offsets = [0, 0], sizes = [8, 128], strides = [1, 1]} : vector<8x512xf32> to vector<8x128xf32>
    %25 = arith.negf %24 : vector<8x128xf32>
    %26 = math.exp %25 : vector<8x128xf32>
    %cst_22 = arith.constant 1.000000e+00 : f32
    %27 = vector.broadcast %cst_22 : f32 to vector<8x128xf32>
    %28 = arith.addf %27, %26 : vector<8x128xf32>
    %29 = arith.divf %27, %28 : vector<8x128xf32>
    %30 = vector.extract_strided_slice %23 {offsets = [0, 128], sizes = [8, 128], strides = [1, 1]} : vector<8x512xf32> to vector<8x128xf32>
    %31 = arith.negf %30 : vector<8x128xf32>
    %32 = math.exp %31 : vector<8x128xf32>
    %cst_23 = arith.constant 1.000000e+00 : f32
    %33 = vector.broadcast %cst_23 : f32 to vector<8x128xf32>
    %34 = arith.addf %33, %32 : vector<8x128xf32>
    %35 = arith.divf %33, %34 : vector<8x128xf32>
    %36 = vector.extract_strided_slice %23 {offsets = [0, 256], sizes = [8, 128], strides = [1, 1]} : vector<8x512xf32> to vector<8x128xf32>
    %37 = math.tanh %36 : vector<8x128xf32>
    %38 = vector.extract_strided_slice %23 {offsets = [0, 384], sizes = [8, 128], strides = [1, 1]} : vector<8x512xf32> to vector<8x128xf32>
    %39 = arith.negf %38 : vector<8x128xf32>
    %40 = math.exp %39 : vector<8x128xf32>
    %cst_24 = arith.constant 1.000000e+00 : f32
    %41 = vector.broadcast %cst_24 : f32 to vector<8x128xf32>
    %42 = arith.addf %41, %40 : vector<8x128xf32>
    %43 = arith.divf %41, %42 : vector<8x128xf32>
    %44 = arith.mulf %35, %17 : vector<8x128xf32>
    %45 = arith.mulf %29, %37 : vector<8x128xf32>
    %46 = arith.addf %44, %45 : vector<8x128xf32>
    %47 = math.tanh %46 : vector<8x128xf32>
    %48 = arith.mulf %43, %47 : vector<8x128xf32>
    %c0_25 = arith.constant 0 : index
    %c0_26 = arith.constant 0 : index
    %49 = vector.load %arg9[%c0_25, %c0_26] : memref<8x128xf32, #tpu.memory_space<vmem>>, vector<8x128xf32>
    tpu.vector_store %arg9[%c0_25, %c0_26], %48 {strides = array<i32>} : memref<8x128xf32, #tpu.memory_space<vmem>>, vector<8x128xf32>,
    %c0_27 = arith.constant 0 : index
    %c0_28 = arith.constant 0 : index
    %50 = vector.load %arg10[%c0_27, %c0_28] : memref<8x128xf32, #tpu.memory_space<vmem>>, vector<8x128xf32>
    tpu.vector_store %arg10[%c0_27, %c0_28], %46 {strides = array<i32>} : memref<8x128xf32, #tpu.memory_space<vmem>>, vector<8x128xf32>,
    %51 = arith.index_cast %15 : i32 to index
    %c0_29 = arith.constant 0 : index
    %c0_30 = arith.constant 0 : index
    %52 = vector.load %arg7[%51, %c0_29, %c0_30] : memref<8x8x128xf32, #tpu.memory_space<vmem>>, vector<1x8x128xf32>
    %53 = vector.shape_cast %52 : vector<1x8x128xf32> to vector<8x128xf32>
    %54 = vector.shape_cast %48 : vector<8x128xf32> to vector<1x8x128xf32>
    tpu.vector_store %arg7[%51, %c0_29, %c0_30], %54 {strides = array<i32>} : memref<8x8x128xf32, #tpu.memory_space<vmem>>, vector<1x8x128xf32>,
    %c1_i32_31 = arith.constant 1 : i32
    %c1_i32_32 = arith.constant 1 : i32
    %55 = arith.muli %c1_i32_31, %c1_i32_32 : i32
    %c0_i32_33 = arith.constant 0 : i32
    %56 = arith.addi %c0_i32_33, %55 : i32
    %c0_34 = arith.constant 0 : index
    %c0_35 = arith.constant 0 : index
    %57 = vector.load %arg9[%c0_34, %c0_35] : memref<8x128xf32, #tpu.memory_space<vmem>>, vector<8x128xf32>
    %c0_36 = arith.constant 0 : index
    %c0_37 = arith.constant 0 : index
    %58 = vector.load %arg10[%c0_36, %c0_37] : memref<8x128xf32, #tpu.memory_space<vmem>>, vector<8x128xf32>
    %59 = arith.index_cast %56 : i32 to index
    %c0_38 = arith.constant 0 : index
    %c0_39 = arith.constant 0 : index
    %60 = vector.load %arg8[%59, %c0_38, %c0_39] : memref<8x8x512xf32, #tpu.memory_space<vmem>>, vector<1x8x512xf32>
    %61 = vector.shape_cast %60 : vector<1x8x512xf32> to vector<8x512xf32>
    %62 = arith.truncf %57 : vector<8x128xf32> to vector<8x128xbf16>
    %cst_40 = arith.constant dense<0.000000e+00> : vector<8x512xf32>
    %63 = tpu.matmul %62, %13, %cst_40 {dimension_numbers = #tpu.dot_dimension_numbers<[1], [0], [0], [1], [0, 0, 1, 1], [], []>} : vector<8x128xbf16>, vector<128x512xbf16>, vector<8x512xf32> -> vector<8x512xf32>
    %64 = arith.addf %61, %63 : vector<8x512xf32>
    %65 = vector.extract_strided_slice %64 {offsets = [0, 0], sizes = [8, 128], strides = [1, 1]} : vector<8x512xf32> to vector<8x128xf32>
    %66 = arith.negf %65 : vector<8x128xf32>
    %67 = math.exp %66 : vector<8x128xf32>
    %cst_41 = arith.constant 1.000000e+00 : f32
    %68 = vector.broadcast %cst_41 : f32 to vector<8x128xf32>
    %69 = arith.addf %68, %67 : vector<8x128xf32>
    %70 = arith.divf %68, %69 : vector<8x128xf32>
    %71 = vector.extract_strided_slice %64 {offsets = [0, 128], sizes = [8, 128], strides = [1, 1]} : vector<8x512xf32> to vector<8x128xf32>
    %72 = arith.negf %71 : vector<8x128xf32>
    %73 = math.exp %72 : vector<8x128xf32>
    %cst_42 = arith.constant 1.000000e+00 : f32
    %74 = vector.broadcast %cst_42 : f32 to vector<8x128xf32>
    %75 = arith.addf %74, %73 : vector<8x128xf32>
    %76 = arith.divf %74, %75 : vector<8x128xf32>
    %77 = vector.extract_strided_slice %64 {offsets = [0, 256], sizes = [8, 128], strides = [1, 1]} : vector<8x512xf32> to vector<8x128xf32>
    %78 = math.tanh %77 : vector<8x128xf32>
    %79 = vector.extract_strided_slice %64 {offsets = [0, 384], sizes = [8, 128], strides = [1, 1]} : vector<8x512xf32> to vector<8x128xf32>
    %80 = arith.negf %79 : vector<8x128xf32>
    %81 = math.exp %80 : vector<8x128xf32>
    %cst_43 = arith.constant 1.000000e+00 : f32
    %82 = vector.broadcast %cst_43 : f32 to vector<8x128xf32>
    %83 = arith.addf %82, %81 : vector<8x128xf32>
    %84 = arith.divf %82, %83 : vector<8x128xf32>
    %85 = arith.mulf %76, %58 : vector<8x128xf32>
    %86 = arith.mulf %70, %78 : vector<8x128xf32>
    %87 = arith.addf %85, %86 : vector<8x128xf32>
    %88 = math.tanh %87 : vector<8x128xf32>
    %89 = arith.mulf %84, %88 : vector<8x128xf32>
    %c0_44 = arith.constant 0 : index
    %c0_45 = arith.constant 0 : index
    %90 = vector.load %arg9[%c0_44, %c0_45] : memref<8x128xf32, #tpu.memory_space<vmem>>, vector<8x128xf32>
    tpu.vector_store %arg9[%c0_44, %c0_45], %89 {strides = array<i32>} : memref<8x128xf32, #tpu.memory_space<vmem>>, vector<8x128xf32>,
    %c0_46 = arith.constant 0 : index
    %c0_47 = arith.constant 0 : index
    %91 = vector.load %arg10[%c0_46, %c0_47] : memref<8x128xf32, #tpu.memory_space<vmem>>, vector<8x128xf32>
    tpu.vector_store %arg10[%c0_46, %c0_47], %87 {strides = array<i32>} : memref<8x128xf32, #tpu.memory_space<vmem>>, vector<8x128xf32>,
    %92 = arith.index_cast %56 : i32 to index
    %c0_48 = arith.constant 0 : index
    %c0_49 = arith.constant 0 : index
    %93 = vector.load %arg7[%92, %c0_48, %c0_49] : memref<8x8x128xf32, #tpu.memory_space<vmem>>, vector<1x8x128xf32>
    %94 = vector.shape_cast %93 : vector<1x8x128xf32> to vector<8x128xf32>
    %95 = vector.shape_cast %89 : vector<8x128xf32> to vector<1x8x128xf32>
    tpu.vector_store %arg7[%92, %c0_48, %c0_49], %95 {strides = array<i32>} : memref<8x8x128xf32, #tpu.memory_space<vmem>>, vector<1x8x128xf32>,
    %c2_i32 = arith.constant 2 : i32
    %c1_i32_50 = arith.constant 1 : i32
    %96 = arith.muli %c2_i32, %c1_i32_50 : i32
    %c0_i32_51 = arith.constant 0 : i32
    %97 = arith.addi %c0_i32_51, %96 : i32
    %c0_52 = arith.constant 0 : index
    %c0_53 = arith.constant 0 : index
    %98 = vector.load %arg9[%c0_52, %c0_53] : memref<8x128xf32, #tpu.memory_space<vmem>>, vector<8x128xf32>
    %c0_54 = arith.constant 0 : index
    %c0_55 = arith.constant 0 : index
    %99 = vector.load %arg10[%c0_54, %c0_55] : memref<8x128xf32, #tpu.memory_space<vmem>>, vector<8x128xf32>
    %100 = arith.index_cast %97 : i32 to index
    %c0_56 = arith.constant 0 : index
    %c0_57 = arith.constant 0 : index
    %101 = vector.load %arg8[%100, %c0_56, %c0_57] : memref<8x8x512xf32, #tpu.memory_space<vmem>>, vector<1x8x512xf32>
    %102 = vector.shape_cast %101 : vector<1x8x512xf32> to vector<8x512xf32>
    %103 = arith.truncf %98 : vector<8x128xf32> to vector<8x128xbf16>
    %cst_58 = arith.constant dense<0.000000e+00> : vector<8x512xf32>
    %104 = tpu.matmul %103, %13, %cst_58 {dimension_numbers = #tpu.dot_dimension_numbers<[1], [0], [0], [1], [0, 0, 1, 1], [], []>} : vector<8x128xbf16>, vector<128x512xbf16>, vector<8x512xf32> -> vector<8x512xf32>
    %105 = arith.addf %102, %104 : vector<8x512xf32>
    %106 = vector.extract_strided_slice %105 {offsets = [0, 0], sizes = [8, 128], strides = [1, 1]} : vector<8x512xf32> to vector<8x128xf32>
    %107 = arith.negf %106 : vector<8x128xf32>
    %108 = math.exp %107 : vector<8x128xf32>
    %cst_59 = arith.constant 1.000000e+00 : f32
    %109 = vector.broadcast %cst_59 : f32 to vector<8x128xf32>
    %110 = arith.addf %109, %108 : vector<8x128xf32>
    %111 = arith.divf %109, %110 : vector<8x128xf32>
    %112 = vector.extract_strided_slice %105 {offsets = [0, 128], sizes = [8, 128], strides = [1, 1]} : vector<8x512xf32> to vector<8x128xf32>
    %113 = arith.negf %112 : vector<8x128xf32>
    %114 = math.exp %113 : vector<8x128xf32>
    %cst_60 = arith.constant 1.000000e+00 : f32
    %115 = vector.broadcast %cst_60 : f32 to vector<8x128xf32>
    %116 = arith.addf %115, %114 : vector<8x128xf32>
    %117 = arith.divf %115, %116 : vector<8x128xf32>
    %118 = vector.extract_strided_slice %105 {offsets = [0, 256], sizes = [8, 128], strides = [1, 1]} : vector<8x512xf32> to vector<8x128xf32>
    %119 = math.tanh %118 : vector<8x128xf32>
    %120 = vector.extract_strided_slice %105 {offsets = [0, 384], sizes = [8, 128], strides = [1, 1]} : vector<8x512xf32> to vector<8x128xf32>
    %121 = arith.negf %120 : vector<8x128xf32>
    %122 = math.exp %121 : vector<8x128xf32>
    %cst_61 = arith.constant 1.000000e+00 : f32
    %123 = vector.broadcast %cst_61 : f32 to vector<8x128xf32>
    %124 = arith.addf %123, %122 : vector<8x128xf32>
    %125 = arith.divf %123, %124 : vector<8x128xf32>
    %126 = arith.mulf %117, %99 : vector<8x128xf32>
    %127 = arith.mulf %111, %119 : vector<8x128xf32>
    %128 = arith.addf %126, %127 : vector<8x128xf32>
    %129 = math.tanh %128 : vector<8x128xf32>
    %130 = arith.mulf %125, %129 : vector<8x128xf32>
    %c0_62 = arith.constant 0 : index
    %c0_63 = arith.constant 0 : index
    %131 = vector.load %arg9[%c0_62, %c0_63] : memref<8x128xf32, #tpu.memory_space<vmem>>, vector<8x128xf32>
    tpu.vector_store %arg9[%c0_62, %c0_63], %130 {strides = array<i32>} : memref<8x128xf32, #tpu.memory_space<vmem>>, vector<8x128xf32>,
    %c0_64 = arith.constant 0 : index
    %c0_65 = arith.constant 0 : index
    %132 = vector.load %arg10[%c0_64, %c0_65] : memref<8x128xf32, #tpu.memory_space<vmem>>, vector<8x128xf32>
    tpu.vector_store %arg10[%c0_64, %c0_65], %128 {strides = array<i32>} : memref<8x128xf32, #tpu.memory_space<vmem>>, vector<8x128xf32>,
    %133 = arith.index_cast %97 : i32 to index
    %c0_66 = arith.constant 0 : index
    %c0_67 = arith.constant 0 : index
    %134 = vector.load %arg7[%133, %c0_66, %c0_67] : memref<8x8x128xf32, #tpu.memory_space<vmem>>, vector<1x8x128xf32>
    %135 = vector.shape_cast %134 : vector<1x8x128xf32> to vector<8x128xf32>
    %136 = vector.shape_cast %130 : vector<8x128xf32> to vector<1x8x128xf32>
    tpu.vector_store %arg7[%133, %c0_66, %c0_67], %136 {strides = array<i32>} : memref<8x8x128xf32, #tpu.memory_space<vmem>>, vector<1x8x128xf32>,
    %c3_i32 = arith.constant 3 : i32
    %c1_i32_68 = arith.constant 1 : i32
    %137 = arith.muli %c3_i32, %c1_i32_68 : i32
    %c0_i32_69 = arith.constant 0 : i32
    %138 = arith.addi %c0_i32_69, %137 : i32
    %c0_70 = arith.constant 0 : index
    %c0_71 = arith.constant 0 : index
    %139 = vector.load %arg9[%c0_70, %c0_71] : memref<8x128xf32, #tpu.memory_space<vmem>>, vector<8x128xf32>
    %c0_72 = arith.constant 0 : index
    %c0_73 = arith.constant 0 : index
    %140 = vector.load %arg10[%c0_72, %c0_73] : memref<8x128xf32, #tpu.memory_space<vmem>>, vector<8x128xf32>
    %141 = arith.index_cast %138 : i32 to index
    %c0_74 = arith.constant 0 : index
    %c0_75 = arith.constant 0 : index
    %142 = vector.load %arg8[%141, %c0_74, %c0_75] : memref<8x8x512xf32, #tpu.memory_space<vmem>>, vector<1x8x512xf32>
    %143 = vector.shape_cast %142 : vector<1x8x512xf32> to vector<8x512xf32>
    %144 = arith.truncf %139 : vector<8x128xf32> to vector<8x128xbf16>
    %cst_76 = arith.constant dense<0.000000e+00> : vector<8x512xf32>
    %145 = tpu.matmul %144, %13, %cst_76 {dimension_numbers = #tpu.dot_dimension_numbers<[1], [0], [0], [1], [0, 0, 1, 1], [], []>} : vector<8x128xbf16>, vector<128x512xbf16>, vector<8x512xf32> -> vector<8x512xf32>
    %146 = arith.addf %143, %145 : vector<8x512xf32>
    %147 = vector.extract_strided_slice %146 {offsets = [0, 0], sizes = [8, 128], strides = [1, 1]} : vector<8x512xf32> to vector<8x128xf32>
    %148 = arith.negf %147 : vector<8x128xf32>
    %149 = math.exp %148 : vector<8x128xf32>
    %cst_77 = arith.constant 1.000000e+00 : f32
    %150 = vector.broadcast %cst_77 : f32 to vector<8x128xf32>
    %151 = arith.addf %150, %149 : vector<8x128xf32>
    %152 = arith.divf %150, %151 : vector<8x128xf32>
    %153 = vector.extract_strided_slice %146 {offsets = [0, 128], sizes = [8, 128], strides = [1, 1]} : vector<8x512xf32> to vector<8x128xf32>
    %154 = arith.negf %153 : vector<8x128xf32>
    %155 = math.exp %154 : vector<8x128xf32>
    %cst_78 = arith.constant 1.000000e+00 : f32
    %156 = vector.broadcast %cst_78 : f32 to vector<8x128xf32>
    %157 = arith.addf %156, %155 : vector<8x128xf32>
    %158 = arith.divf %156, %157 : vector<8x128xf32>
    %159 = vector.extract_strided_slice %146 {offsets = [0, 256], sizes = [8, 128], strides = [1, 1]} : vector<8x512xf32> to vector<8x128xf32>
    %160 = math.tanh %159 : vector<8x128xf32>
    %161 = vector.extract_strided_slice %146 {offsets = [0, 384], sizes = [8, 128], strides = [1, 1]} : vector<8x512xf32> to vector<8x128xf32>
    %162 = arith.negf %161 : vector<8x128xf32>
    %163 = math.exp %162 : vector<8x128xf32>
    %cst_79 = arith.constant 1.000000e+00 : f32
    %164 = vector.broadcast %cst_79 : f32 to vector<8x128xf32>
    %165 = arith.addf %164, %163 : vector<8x128xf32>
    %166 = arith.divf %164, %165 : vector<8x128xf32>
    %167 = arith.mulf %158, %140 : vector<8x128xf32>
    %168 = arith.mulf %152, %160 : vector<8x128xf32>
    %169 = arith.addf %167, %168 : vector<8x128xf32>
    %170 = math.tanh %169 : vector<8x128xf32>
    %171 = arith.mulf %166, %170 : vector<8x128xf32>
    %c0_80 = arith.constant 0 : index
    %c0_81 = arith.constant 0 : index
    %172 = vector.load %arg9[%c0_80, %c0_81] : memref<8x128xf32, #tpu.memory_space<vmem>>, vector<8x128xf32>
    tpu.vector_store %arg9[%c0_80, %c0_81], %171 {strides = array<i32>} : memref<8x128xf32, #tpu.memory_space<vmem>>, vector<8x128xf32>,
    %c0_82 = arith.constant 0 : index
    %c0_83 = arith.constant 0 : index
    %173 = vector.load %arg10[%c0_82, %c0_83] : memref<8x128xf32, #tpu.memory_space<vmem>>, vector<8x128xf32>
    tpu.vector_store %arg10[%c0_82, %c0_83], %169 {strides = array<i32>} : memref<8x128xf32, #tpu.memory_space<vmem>>, vector<8x128xf32>,
    %174 = arith.index_cast %138 : i32 to index
    %c0_84 = arith.constant 0 : index
    %c0_85 = arith.constant 0 : index
    %175 = vector.load %arg7[%174, %c0_84, %c0_85] : memref<8x8x128xf32, #tpu.memory_space<vmem>>, vector<1x8x128xf32>
    %176 = vector.shape_cast %175 : vector<1x8x128xf32> to vector<8x128xf32>
    %177 = vector.shape_cast %171 : vector<8x128xf32> to vector<1x8x128xf32>
    tpu.vector_store %arg7[%174, %c0_84, %c0_85], %177 {strides = array<i32>} : memref<8x8x128xf32, #tpu.memory_space<vmem>>, vector<1x8x128xf32>,
    %c4_i32 = arith.constant 4 : i32
    %c1_i32_86 = arith.constant 1 : i32
    %178 = arith.muli %c4_i32, %c1_i32_86 : i32
    %c0_i32_87 = arith.constant 0 : i32
    %179 = arith.addi %c0_i32_87, %178 : i32
    %c0_88 = arith.constant 0 : index
    %c0_89 = arith.constant 0 : index
    %180 = vector.load %arg9[%c0_88, %c0_89] : memref<8x128xf32, #tpu.memory_space<vmem>>, vector<8x128xf32>
    %c0_90 = arith.constant 0 : index
    %c0_91 = arith.constant 0 : index
    %181 = vector.load %arg10[%c0_90, %c0_91] : memref<8x128xf32, #tpu.memory_space<vmem>>, vector<8x128xf32>
    %182 = arith.index_cast %179 : i32 to index
    %c0_92 = arith.constant 0 : index
    %c0_93 = arith.constant 0 : index
    %183 = vector.load %arg8[%182, %c0_92, %c0_93] : memref<8x8x512xf32, #tpu.memory_space<vmem>>, vector<1x8x512xf32>
    %184 = vector.shape_cast %183 : vector<1x8x512xf32> to vector<8x512xf32>
    %185 = arith.truncf %180 : vector<8x128xf32> to vector<8x128xbf16>
    %cst_94 = arith.constant dense<0.000000e+00> : vector<8x512xf32>
    %186 = tpu.matmul %185, %13, %cst_94 {dimension_numbers = #tpu.dot_dimension_numbers<[1], [0], [0], [1], [0, 0, 1, 1], [], []>} : vector<8x128xbf16>, vector<128x512xbf16>, vector<8x512xf32> -> vector<8x512xf32>
    %187 = arith.addf %184, %186 : vector<8x512xf32>
    %188 = vector.extract_strided_slice %187 {offsets = [0, 0], sizes = [8, 128], strides = [1, 1]} : vector<8x512xf32> to vector<8x128xf32>
    %189 = arith.negf %188 : vector<8x128xf32>
    %190 = math.exp %189 : vector<8x128xf32>
    %cst_95 = arith.constant 1.000000e+00 : f32
    %191 = vector.broadcast %cst_95 : f32 to vector<8x128xf32>
    %192 = arith.addf %191, %190 : vector<8x128xf32>
    %193 = arith.divf %191, %192 : vector<8x128xf32>
    %194 = vector.extract_strided_slice %187 {offsets = [0, 128], sizes = [8, 128], strides = [1, 1]} : vector<8x512xf32> to vector<8x128xf32>
    %195 = arith.negf %194 : vector<8x128xf32>
    %196 = math.exp %195 : vector<8x128xf32>
    %cst_96 = arith.constant 1.000000e+00 : f32
    %197 = vector.broadcast %cst_96 : f32 to vector<8x128xf32>
    %198 = arith.addf %197, %196 : vector<8x128xf32>
    %199 = arith.divf %197, %198 : vector<8x128xf32>
    %200 = vector.extract_strided_slice %187 {offsets = [0, 256], sizes = [8, 128], strides = [1, 1]} : vector<8x512xf32> to vector<8x128xf32>
    %201 = math.tanh %200 : vector<8x128xf32>
    %202 = vector.extract_strided_slice %187 {offsets = [0, 384], sizes = [8, 128], strides = [1, 1]} : vector<8x512xf32> to vector<8x128xf32>
    %203 = arith.negf %202 : vector<8x128xf32>
    %204 = math.exp %203 : vector<8x128xf32>
    %cst_97 = arith.constant 1.000000e+00 : f32
    %205 = vector.broadcast %cst_97 : f32 to vector<8x128xf32>
    %206 = arith.addf %205, %204 : vector<8x128xf32>
    %207 = arith.divf %205, %206 : vector<8x128xf32>
    %208 = arith.mulf %199, %181 : vector<8x128xf32>
    %209 = arith.mulf %193, %201 : vector<8x128xf32>
    %210 = arith.addf %208, %209 : vector<8x128xf32>
    %211 = math.tanh %210 : vector<8x128xf32>
    %212 = arith.mulf %207, %211 : vector<8x128xf32>
    %c0_98 = arith.constant 0 : index
    %c0_99 = arith.constant 0 : index
    %213 = vector.load %arg9[%c0_98, %c0_99] : memref<8x128xf32, #tpu.memory_space<vmem>>, vector<8x128xf32>
    tpu.vector_store %arg9[%c0_98, %c0_99], %212 {strides = array<i32>} : memref<8x128xf32, #tpu.memory_space<vmem>>, vector<8x128xf32>,
    %c0_100 = arith.constant 0 : index
    %c0_101 = arith.constant 0 : index
    %214 = vector.load %arg10[%c0_100, %c0_101] : memref<8x128xf32, #tpu.memory_space<vmem>>, vector<8x128xf32>
    tpu.vector_store %arg10[%c0_100, %c0_101], %210 {strides = array<i32>} : memref<8x128xf32, #tpu.memory_space<vmem>>, vector<8x128xf32>,
    %215 = arith.index_cast %179 : i32 to index
    %c0_102 = arith.constant 0 : index
    %c0_103 = arith.constant 0 : index
    %216 = vector.load %arg7[%215, %c0_102, %c0_103] : memref<8x8x128xf32, #tpu.memory_space<vmem>>, vector<1x8x128xf32>
    %217 = vector.shape_cast %216 : vector<1x8x128xf32> to vector<8x128xf32>
    %218 = vector.shape_cast %212 : vector<8x128xf32> to vector<1x8x128xf32>
    tpu.vector_store %arg7[%215, %c0_102, %c0_103], %218 {strides = array<i32>} : memref<8x8x128xf32, #tpu.memory_space<vmem>>, vector<1x8x128xf32>,
    %c5_i32 = arith.constant 5 : i32
    %c1_i32_104 = arith.constant 1 : i32
    %219 = arith.muli %c5_i32, %c1_i32_104 : i32
    %c0_i32_105 = arith.constant 0 : i32
    %220 = arith.addi %c0_i32_105, %219 : i32
    %c0_106 = arith.constant 0 : index
    %c0_107 = arith.constant 0 : index
    %221 = vector.load %arg9[%c0_106, %c0_107] : memref<8x128xf32, #tpu.memory_space<vmem>>, vector<8x128xf32>
    %c0_108 = arith.constant 0 : index
    %c0_109 = arith.constant 0 : index
    %222 = vector.load %arg10[%c0_108, %c0_109] : memref<8x128xf32, #tpu.memory_space<vmem>>, vector<8x128xf32>
    %223 = arith.index_cast %220 : i32 to index
    %c0_110 = arith.constant 0 : index
    %c0_111 = arith.constant 0 : index
    %224 = vector.load %arg8[%223, %c0_110, %c0_111] : memref<8x8x512xf32, #tpu.memory_space<vmem>>, vector<1x8x512xf32>
    %225 = vector.shape_cast %224 : vector<1x8x512xf32> to vector<8x512xf32>
    %226 = arith.truncf %221 : vector<8x128xf32> to vector<8x128xbf16>
    %cst_112 = arith.constant dense<0.000000e+00> : vector<8x512xf32>
    %227 = tpu.matmul %226, %13, %cst_112 {dimension_numbers = #tpu.dot_dimension_numbers<[1], [0], [0], [1], [0, 0, 1, 1], [], []>} : vector<8x128xbf16>, vector<128x512xbf16>, vector<8x512xf32> -> vector<8x512xf32>
    %228 = arith.addf %225, %227 : vector<8x512xf32>
    %229 = vector.extract_strided_slice %228 {offsets = [0, 0], sizes = [8, 128], strides = [1, 1]} : vector<8x512xf32> to vector<8x128xf32>
    %230 = arith.negf %229 : vector<8x128xf32>
    %231 = math.exp %230 : vector<8x128xf32>
    %cst_113 = arith.constant 1.000000e+00 : f32
    %232 = vector.broadcast %cst_113 : f32 to vector<8x128xf32>
    %233 = arith.addf %232, %231 : vector<8x128xf32>
    %234 = arith.divf %232, %233 : vector<8x128xf32>
    %235 = vector.extract_strided_slice %228 {offsets = [0, 128], sizes = [8, 128], strides = [1, 1]} : vector<8x512xf32> to vector<8x128xf32>
    %236 = arith.negf %235 : vector<8x128xf32>
    %237 = math.exp %236 : vector<8x128xf32>
    %cst_114 = arith.constant 1.000000e+00 : f32
    %238 = vector.broadcast %cst_114 : f32 to vector<8x128xf32>
    %239 = arith.addf %238, %237 : vector<8x128xf32>
    %240 = arith.divf %238, %239 : vector<8x128xf32>
    %241 = vector.extract_strided_slice %228 {offsets = [0, 256], sizes = [8, 128], strides = [1, 1]} : vector<8x512xf32> to vector<8x128xf32>
    %242 = math.tanh %241 : vector<8x128xf32>
    %243 = vector.extract_strided_slice %228 {offsets = [0, 384], sizes = [8, 128], strides = [1, 1]} : vector<8x512xf32> to vector<8x128xf32>
    %244 = arith.negf %243 : vector<8x128xf32>
    %245 = math.exp %244 : vector<8x128xf32>
    %cst_115 = arith.constant 1.000000e+00 : f32
    %246 = vector.broadcast %cst_115 : f32 to vector<8x128xf32>
    %247 = arith.addf %246, %245 : vector<8x128xf32>
    %248 = arith.divf %246, %247 : vector<8x128xf32>
    %249 = arith.mulf %240, %222 : vector<8x128xf32>
    %250 = arith.mulf %234, %242 : vector<8x128xf32>
    %251 = arith.addf %249, %250 : vector<8x128xf32>
    %252 = math.tanh %251 : vector<8x128xf32>
    %253 = arith.mulf %248, %252 : vector<8x128xf32>
    %c0_116 = arith.constant 0 : index
    %c0_117 = arith.constant 0 : index
    %254 = vector.load %arg9[%c0_116, %c0_117] : memref<8x128xf32, #tpu.memory_space<vmem>>, vector<8x128xf32>
    tpu.vector_store %arg9[%c0_116, %c0_117], %253 {strides = array<i32>} : memref<8x128xf32, #tpu.memory_space<vmem>>, vector<8x128xf32>,
    %c0_118 = arith.constant 0 : index
    %c0_119 = arith.constant 0 : index
    %255 = vector.load %arg10[%c0_118, %c0_119] : memref<8x128xf32, #tpu.memory_space<vmem>>, vector<8x128xf32>
    tpu.vector_store %arg10[%c0_118, %c0_119], %251 {strides = array<i32>} : memref<8x128xf32, #tpu.memory_space<vmem>>, vector<8x128xf32>,
    %256 = arith.index_cast %220 : i32 to index
    %c0_120 = arith.constant 0 : index
    %c0_121 = arith.constant 0 : index
    %257 = vector.load %arg7[%256, %c0_120, %c0_121] : memref<8x8x128xf32, #tpu.memory_space<vmem>>, vector<1x8x128xf32>
    %258 = vector.shape_cast %257 : vector<1x8x128xf32> to vector<8x128xf32>
    %259 = vector.shape_cast %253 : vector<8x128xf32> to vector<1x8x128xf32>
    tpu.vector_store %arg7[%256, %c0_120, %c0_121], %259 {strides = array<i32>} : memref<8x8x128xf32, #tpu.memory_space<vmem>>, vector<1x8x128xf32>,
    %c6_i32 = arith.constant 6 : i32
    %c1_i32_122 = arith.constant 1 : i32
    %260 = arith.muli %c6_i32, %c1_i32_122 : i32
    %c0_i32_123 = arith.constant 0 : i32
    %261 = arith.addi %c0_i32_123, %260 : i32
    %c0_124 = arith.constant 0 : index
    %c0_125 = arith.constant 0 : index
    %262 = vector.load %arg9[%c0_124, %c0_125] : memref<8x128xf32, #tpu.memory_space<vmem>>, vector<8x128xf32>
    %c0_126 = arith.constant 0 : index
    %c0_127 = arith.constant 0 : index
    %263 = vector.load %arg10[%c0_126, %c0_127] : memref<8x128xf32, #tpu.memory_space<vmem>>, vector<8x128xf32>
    %264 = arith.index_cast %261 : i32 to index
    %c0_128 = arith.constant 0 : index
    %c0_129 = arith.constant 0 : index
    %265 = vector.load %arg8[%264, %c0_128, %c0_129] : memref<8x8x512xf32, #tpu.memory_space<vmem>>, vector<1x8x512xf32>
    %266 = vector.shape_cast %265 : vector<1x8x512xf32> to vector<8x512xf32>
    %267 = arith.truncf %262 : vector<8x128xf32> to vector<8x128xbf16>
    %cst_130 = arith.constant dense<0.000000e+00> : vector<8x512xf32>
    %268 = tpu.matmul %267, %13, %cst_130 {dimension_numbers = #tpu.dot_dimension_numbers<[1], [0], [0], [1], [0, 0, 1, 1], [], []>} : vector<8x128xbf16>, vector<128x512xbf16>, vector<8x512xf32> -> vector<8x512xf32>
    %269 = arith.addf %266, %268 : vector<8x512xf32>
    %270 = vector.extract_strided_slice %269 {offsets = [0, 0], sizes = [8, 128], strides = [1, 1]} : vector<8x512xf32> to vector<8x128xf32>
    %271 = arith.negf %270 : vector<8x128xf32>
    %272 = math.exp %271 : vector<8x128xf32>
    %cst_131 = arith.constant 1.000000e+00 : f32
    %273 = vector.broadcast %cst_131 : f32 to vector<8x128xf32>
    %274 = arith.addf %273, %272 : vector<8x128xf32>
    %275 = arith.divf %273, %274 : vector<8x128xf32>
    %276 = vector.extract_strided_slice %269 {offsets = [0, 128], sizes = [8, 128], strides = [1, 1]} : vector<8x512xf32> to vector<8x128xf32>
    %277 = arith.negf %276 : vector<8x128xf32>
    %278 = math.exp %277 : vector<8x128xf32>
    %cst_132 = arith.constant 1.000000e+00 : f32
    %279 = vector.broadcast %cst_132 : f32 to vector<8x128xf32>
    %280 = arith.addf %279, %278 : vector<8x128xf32>
    %281 = arith.divf %279, %280 : vector<8x128xf32>
    %282 = vector.extract_strided_slice %269 {offsets = [0, 256], sizes = [8, 128], strides = [1, 1]} : vector<8x512xf32> to vector<8x128xf32>
    %283 = math.tanh %282 : vector<8x128xf32>
    %284 = vector.extract_strided_slice %269 {offsets = [0, 384], sizes = [8, 128], strides = [1, 1]} : vector<8x512xf32> to vector<8x128xf32>
    %285 = arith.negf %284 : vector<8x128xf32>
    %286 = math.exp %285 : vector<8x128xf32>
    %cst_133 = arith.constant 1.000000e+00 : f32
    %287 = vector.broadcast %cst_133 : f32 to vector<8x128xf32>
    %288 = arith.addf %287, %286 : vector<8x128xf32>
    %289 = arith.divf %287, %288 : vector<8x128xf32>
    %290 = arith.mulf %281, %263 : vector<8x128xf32>
    %291 = arith.mulf %275, %283 : vector<8x128xf32>
    %292 = arith.addf %290, %291 : vector<8x128xf32>
    %293 = math.tanh %292 : vector<8x128xf32>
    %294 = arith.mulf %289, %293 : vector<8x128xf32>
    %c0_134 = arith.constant 0 : index
    %c0_135 = arith.constant 0 : index
    %295 = vector.load %arg9[%c0_134, %c0_135] : memref<8x128xf32, #tpu.memory_space<vmem>>, vector<8x128xf32>
    tpu.vector_store %arg9[%c0_134, %c0_135], %294 {strides = array<i32>} : memref<8x128xf32, #tpu.memory_space<vmem>>, vector<8x128xf32>,
    %c0_136 = arith.constant 0 : index
    %c0_137 = arith.constant 0 : index
    %296 = vector.load %arg10[%c0_136, %c0_137] : memref<8x128xf32, #tpu.memory_space<vmem>>, vector<8x128xf32>
    tpu.vector_store %arg10[%c0_136, %c0_137], %292 {strides = array<i32>} : memref<8x128xf32, #tpu.memory_space<vmem>>, vector<8x128xf32>,
    %297 = arith.index_cast %261 : i32 to index
    %c0_138 = arith.constant 0 : index
    %c0_139 = arith.constant 0 : index
    %298 = vector.load %arg7[%297, %c0_138, %c0_139] : memref<8x8x128xf32, #tpu.memory_space<vmem>>, vector<1x8x128xf32>
    %299 = vector.shape_cast %298 : vector<1x8x128xf32> to vector<8x128xf32>
    %300 = vector.shape_cast %294 : vector<8x128xf32> to vector<1x8x128xf32>
    tpu.vector_store %arg7[%297, %c0_138, %c0_139], %300 {strides = array<i32>} : memref<8x8x128xf32, #tpu.memory_space<vmem>>, vector<1x8x128xf32>,
    %c7_i32 = arith.constant 7 : i32
    %c1_i32_140 = arith.constant 1 : i32
    %301 = arith.muli %c7_i32, %c1_i32_140 : i32
    %c0_i32_141 = arith.constant 0 : i32
    %302 = arith.addi %c0_i32_141, %301 : i32
    %c0_142 = arith.constant 0 : index
    %c0_143 = arith.constant 0 : index
    %303 = vector.load %arg9[%c0_142, %c0_143] : memref<8x128xf32, #tpu.memory_space<vmem>>, vector<8x128xf32>
    %c0_144 = arith.constant 0 : index
    %c0_145 = arith.constant 0 : index
    %304 = vector.load %arg10[%c0_144, %c0_145] : memref<8x128xf32, #tpu.memory_space<vmem>>, vector<8x128xf32>
    %305 = arith.index_cast %302 : i32 to index
    %c0_146 = arith.constant 0 : index
    %c0_147 = arith.constant 0 : index
    %306 = vector.load %arg8[%305, %c0_146, %c0_147] : memref<8x8x512xf32, #tpu.memory_space<vmem>>, vector<1x8x512xf32>
    %307 = vector.shape_cast %306 : vector<1x8x512xf32> to vector<8x512xf32>
    %308 = arith.truncf %303 : vector<8x128xf32> to vector<8x128xbf16>
    %cst_148 = arith.constant dense<0.000000e+00> : vector<8x512xf32>
    %309 = tpu.matmul %308, %13, %cst_148 {dimension_numbers = #tpu.dot_dimension_numbers<[1], [0], [0], [1], [0, 0, 1, 1], [], []>} : vector<8x128xbf16>, vector<128x512xbf16>, vector<8x512xf32> -> vector<8x512xf32>
    %310 = arith.addf %307, %309 : vector<8x512xf32>
    %311 = vector.extract_strided_slice %310 {offsets = [0, 0], sizes = [8, 128], strides = [1, 1]} : vector<8x512xf32> to vector<8x128xf32>
    %312 = arith.negf %311 : vector<8x128xf32>
    %313 = math.exp %312 : vector<8x128xf32>
    %cst_149 = arith.constant 1.000000e+00 : f32
    %314 = vector.broadcast %cst_149 : f32 to vector<8x128xf32>
    %315 = arith.addf %314, %313 : vector<8x128xf32>
    %316 = arith.divf %314, %315 : vector<8x128xf32>
    %317 = vector.extract_strided_slice %310 {offsets = [0, 128], sizes = [8, 128], strides = [1, 1]} : vector<8x512xf32> to vector<8x128xf32>
    %318 = arith.negf %317 : vector<8x128xf32>
    %319 = math.exp %318 : vector<8x128xf32>
    %cst_150 = arith.constant 1.000000e+00 : f32
    %320 = vector.broadcast %cst_150 : f32 to vector<8x128xf32>
    %321 = arith.addf %320, %319 : vector<8x128xf32>
    %322 = arith.divf %320, %321 : vector<8x128xf32>
    %323 = vector.extract_strided_slice %310 {offsets = [0, 256], sizes = [8, 128], strides = [1, 1]} : vector<8x512xf32> to vector<8x128xf32>
    %324 = math.tanh %323 : vector<8x128xf32>
    %325 = vector.extract_strided_slice %310 {offsets = [0, 384], sizes = [8, 128], strides = [1, 1]} : vector<8x512xf32> to vector<8x128xf32>
    %326 = arith.negf %325 : vector<8x128xf32>
    %327 = math.exp %326 : vector<8x128xf32>
    %cst_151 = arith.constant 1.000000e+00 : f32
    %328 = vector.broadcast %cst_151 : f32 to vector<8x128xf32>
    %329 = arith.addf %328, %327 : vector<8x128xf32>
    %330 = arith.divf %328, %329 : vector<8x128xf32>
    %331 = arith.mulf %322, %304 : vector<8x128xf32>
    %332 = arith.mulf %316, %324 : vector<8x128xf32>
    %333 = arith.addf %331, %332 : vector<8x128xf32>
    %334 = math.tanh %333 : vector<8x128xf32>
    %335 = arith.mulf %330, %334 : vector<8x128xf32>
    %c0_152 = arith.constant 0 : index
    %c0_153 = arith.constant 0 : index
    %336 = vector.load %arg9[%c0_152, %c0_153] : memref<8x128xf32, #tpu.memory_space<vmem>>, vector<8x128xf32>
    tpu.vector_store %arg9[%c0_152, %c0_153], %335 {strides = array<i32>} : memref<8x128xf32, #tpu.memory_space<vmem>>, vector<8x128xf32>,
    %c0_154 = arith.constant 0 : index
    %c0_155 = arith.constant 0 : index
    %337 = vector.load %arg10[%c0_154, %c0_155] : memref<8x128xf32, #tpu.memory_space<vmem>>, vector<8x128xf32>
    tpu.vector_store %arg10[%c0_154, %c0_155], %333 {strides = array<i32>} : memref<8x128xf32, #tpu.memory_space<vmem>>, vector<8x128xf32>,
    %338 = arith.index_cast %302 : i32 to index
    %c0_156 = arith.constant 0 : index
    %c0_157 = arith.constant 0 : index
    %339 = vector.load %arg7[%338, %c0_156, %c0_157] : memref<8x8x128xf32, #tpu.memory_space<vmem>>, vector<1x8x128xf32>
    %340 = vector.shape_cast %339 : vector<1x8x128xf32> to vector<8x128xf32>
    %341 = vector.shape_cast %335 : vector<8x128xf32> to vector<1x8x128xf32>
    tpu.vector_store %arg7[%338, %c0_156, %c0_157], %341 {strides = array<i32>} : memref<8x8x128xf32, #tpu.memory_space<vmem>>, vector<1x8x128xf32>,
    %c8_i32 = arith.constant 8 : i32
    %c1_i32_158 = arith.constant 1 : i32
    %342 = arith.cmpi eq, %arg1, %c1_i32_158 : i32
    %343 = arith.extui %342 : i1 to i32
    %c0_i32_159 = arith.constant 0 : i32
    %344 = arith.cmpi ne, %343, %c0_i32_159 : i32
    scf.if %344 {
      %c0_160 = arith.constant 0 : index
      %c0_161 = arith.constant 0 : index
      %345 = vector.load %arg9[%c0_160, %c0_161] : memref<8x128xf32, #tpu.memory_space<vmem>>, vector<8x128xf32>
      %c0_162 = arith.constant 0 : index
      %c0_163 = arith.constant 0 : index
      %346 = vector.load %arg6[%c0_162, %c0_163] : memref<8x128xf32, #tpu.memory_space<vmem>>, vector<8x128xf32>
      tpu.vector_store %arg6[%c0_162, %c0_163], %345 {strides = array<i32>} : memref<8x128xf32, #tpu.memory_space<vmem>>, vector<8x128xf32>,
    } else {
    }
    return
  }
  func.func @transform_0(%arg0: i32, %arg1: i32) -> (i32, i32, i32) {
    %c0_i32 = arith.constant 0 : i32
    %c0_i32_0 = arith.constant 0 : i32
    %c0_i32_1 = arith.constant 0 : i32
    return %c0_i32, %arg0, %c0_i32_0 : i32, i32, i32
  }
  func.func @transform_1(%arg0: i32, %arg1: i32) -> (i32, i32, i32) {
    %c0_i32 = arith.constant 0 : i32
    %c0_i32_0 = arith.constant 0 : i32
    %c0_i32_1 = arith.constant 0 : i32
    return %arg1, %c0_i32, %c0_i32_0 : i32, i32, i32
  }
  func.func @transform_2(%arg0: i32, %arg1: i32) -> (i32, i32, i32) {
    %c0_i32 = arith.constant 0 : i32
    %c0_i32_0 = arith.constant 0 : i32
    %c0_i32_1 = arith.constant 0 : i32
    return %arg1, %c0_i32, %c0_i32_0 : i32, i32, i32
  }
  func.func @transform_3(%arg0: i32, %arg1: i32) -> (i32, i32, i32) {
    %c0_i32 = arith.constant 0 : i32
    %c0_i32_0 = arith.constant 0 : i32
    %c0_i32_1 = arith.constant 0 : i32
    return %arg1, %c0_i32, %c0_i32_0 : i32, i32, i32
  }
  func.func @transform_4(%arg0: i32, %arg1: i32) -> (i32, i32) {
    %c0_i32 = arith.constant 0 : i32
    %c0_i32_0 = arith.constant 0 : i32
    return %arg0, %c0_i32 : i32, i32
  }
}

</mosaic_0001>

<llo_original>
// kernel: lstm_model_forward.1
$region0: #{lstm_model_forward.1}
  #allocation0 [shape = 'u32[]', space=smem, size = 0x4, offset = 0x4, fixed_abs, tag = 'smem constant byte address 0x4 - core index']
  #allocation1 [shape = 'u32[144,128]{1,0:T(1,128)}', space=vmem, size = 0x12000, scoped, tag = 'internal scratch']
  #allocation2 [shape = 'f32[8,8,128]{2,1,0:T(8,128)}', space=vmem, size = 0x8000, scoped, tag = 'scratch operand']
  #allocation3 [shape = 'f32[8,8,512]{2,1,0:T(8,128)}', space=vmem, size = 0x20000, scoped, tag = 'scratch operand']
  #allocation4 [shape = 'f32[8,128]{1,0:T(8,128)}', space=vmem, size = 0x1000, scoped, tag = 'scratch operand']
  #allocation5 [shape = 'f32[8,128]{1,0:T(8,128)}', space=vmem, size = 0x1000, scoped, tag = 'scratch operand']
  %s0 = inlined_call_operand.vmem [shape: f32[8,8,512], index: 0, kind: input, shape index: {}]
  %s1 = inlined_call_operand.vmem [shape: bf16[2,128,512], index: 1, kind: input, shape index: {}]
  %s2 = inlined_call_operand.vmem [shape: bf16[2,128,512], index: 2, kind: input, shape index: {}]
  %s3 = inlined_call_operand.vmem [shape: f32[2,1,512], index: 3, kind: input, shape index: {}]
  %s4 = inlined_call_operand.vmem [shape: f32[8,128], index: 4, kind: output, shape index: {}]
  %s5 = sld [smem:[#allocation0]]
  $region61: #{lstm_model_forward.1} parent=0
    _
  %s7 = ssub.s32 1, %s5
  %s8 = scalar_select 0, %s7, %s5
  loop: start=0, step=1, limit=4
  $region2: #{lstm_model_forward.1} parent=0 // loop_pre_header
    _
  $region3: #{lstm_model_forward.1} parent=0 // loop_header
    %s10 = sphi 0, %s14
    %p11 = scmp.ge.s32.totalorder %s10, 4
    %s17 = sphi 0, %s29
    %s18 = sphi 0, %s25
    %s19 = sphi 0, %s17
    %s20 = sphi 0, %s18
    %s21 = sphi 0, %s19
    %s22 = sphi 0, %s20
    %s32 = sphi 0, %s34
    %s35 = sphi 0, %s32
    %s36 = sphi 0, %s35
    %s52 = sphi 0, %s36
    %s58 = sphi 0, %s60
    %s61 = sphi 0, %s58
    %s62 = sphi 0, %s61
    %s78 = sphi 0, %s62
    %s84 = sphi 0, %s86
    %s87 = sphi 0, %s84
    %s88 = sphi 0, %s87
    %s104 = sphi 0, %s88
    %s110 = sphi 0, %s112
    %s113 = sphi 0, %s110
    %s114 = sphi 0, %s113
    %s130 = sphi 0, %s114
    %s136 = sphi 0, %s138
    %s139 = sphi 0, %s136
    %s140 = sphi 0, %s139
    %s156 = sphi 0, %s140
  $region4: #{lstm_model_forward.1} parent=0 // loop_header_branch
    %13 = sbr.rel (%p11) target = $region8
  $region5: #{lstm_model_forward.1} parent=0 // loop_body
    %s15 = ssub.s32 %s10, 1
    %s16 = ssub.s32 %s10, 2
    %s23 = sadd.s32 1, %s18
    %p24 = scmp.ge.s32.totalorder %s23, 2
    %s25 = scalar_select %p24, 0, %s23
    %s26 = sadd.s32 1, %s17
    %s27 = scalar_select %p24, %s26, %s17
    %p28 = scmp.ge.s32.totalorder %s27, 1
    %s29 = scalar_select %p28, 0, %s27
    %s30 = ssub.s32 %s17, %s29
    %p31 = scmp.eq.s32.totalorder %s30, 0
    %s33 = sadd.s32 %s32, 1
    %s34 = scalar_select %p31, %s32, %s33
    %p37 = pneg %p31
    %p38 = scmp.eq.s32.totalorder %s10, 1
    %p39 = por %p37, %p38
    %p40 = scmp.ne.s32.totalorder %s32, %s35
    %p41 = scmp.eq.s32.totalorder %s10, 0
    %p42 = por %p40, %p41
    %p43 = scmp.ne.s32.totalorder %s32, %s35
    %p44 = scmp.eq.s32.totalorder %s15, 1
    %p45 = por %p43, %p44
    %p46 = scmp.ne.s32.totalorder %s35, %s36
    %p47 = scmp.eq.s32.totalorder %s15, 0
    %p48 = por %p46, %p47
    %p49 = scmp.ne.s32.totalorder %s35, %s36
    %p50 = scmp.eq.s32.totalorder %s16, 1
    %p51 = por %p49, %p50
    %p53 = scmp.ne.s32.totalorder %s36, %s52
    %p54 = scmp.eq.s32.totalorder %s16, 0
    %p55 = por %p53, %p54
    %s56 = ssub.s32 %s18, %s25
    %p57 = scmp.eq.s32.totalorder %s56, 0
    %s59 = sadd.s32 %s58, 1
    %s60 = scalar_select %p57, %s58, %s59
    %p63 = pneg %p57
    %p64 = scmp.eq.s32.totalorder %s10, 1
    %p65 = por %p63, %p64
    %p66 = scmp.ne.s32.totalorder %s58, %s61
    %p67 = scmp.eq.s32.totalorder %s10, 0
    %p68 = por %p66, %p67
    %p69 = scmp.ne.s32.totalorder %s58, %s61
    %p70 = scmp.eq.s32.totalorder %s15, 1
    %p71 = por %p69, %p70
    %p72 = scmp.ne.s32.totalorder %s61, %s62
    %p73 = scmp.eq.s32.totalorder %s15, 0
    %p74 = por %p72, %p73
    %p75 = scmp.ne.s32.totalorder %s61, %s62
    %p76 = scmp.eq.s32.totalorder %s16, 1
    %p77 = por %p75, %p76
    %p79 = scmp.ne.s32.totalorder %s62, %s78
    %p80 = scmp.eq.s32.totalorder %s16, 0
    %p81 = por %p79, %p80
    %s82 = ssub.s32 %s18, %s25
    %p83 = scmp.eq.s32.totalorder %s82, 0
    %s85 = sadd.s32 %s84, 1
    %s86 = scalar_select %p83, %s84, %s85
    %p89 = pneg %p83
    %p90 = scmp.eq.s32.totalorder %s10, 1
    %p91 = por %p89, %p90
    %p92 = scmp.ne.s32.totalorder %s84, %s87
    %p93 = scmp.eq.s32.totalorder %s10, 0
    %p94 = por %p92, %p93
    %p95 = scmp.ne.s32.totalorder %s84, %s87
    %p96 = scmp.eq.s32.totalorder %s15, 1
    %p97 = por %p95, %p96
    %p98 = scmp.ne.s32.totalorder %s87, %s88
    %p99 = scmp.eq.s32.totalorder %s15, 0
    %p100 = por %p98, %p99
    %p101 = scmp.ne.s32.totalorder %s87, %s88
    %p102 = scmp.eq.s32.totalorder %s16, 1
    %p103 = por %p101, %p102
    %p105 = scmp.ne.s32.totalorder %s88, %s104
    %p106 = scmp.eq.s32.totalorder %s16, 0
    %p107 = por %p105, %p106
    %s108 = ssub.s32 %s18, %s25
    %p109 = scmp.eq.s32.totalorder %s108, 0
    %s111 = sadd.s32 %s110, 1
    %s112 = scalar_select %p109, %s110, %s111
    %p115 = pneg %p109
    %p116 = scmp.eq.s32.totalorder %s10, 1
    %p117 = por %p115, %p116
    %p118 = scmp.ne.s32.totalorder %s110, %s113
    %p119 = scmp.eq.s32.totalorder %s10, 0
    %p120 = por %p118, %p119
    %p121 = scmp.ne.s32.totalorder %s110, %s113
    %p122 = scmp.eq.s32.totalorder %s15, 1
    %p123 = por %p121, %p122
    %p124 = scmp.ne.s32.totalorder %s113, %s114
    %p125 = scmp.eq.s32.totalorder %s15, 0
    %p126 = por %p124, %p125
    %p127 = scmp.ne.s32.totalorder %s113, %s114
    %p128 = scmp.eq.s32.totalorder %s16, 1
    %p129 = por %p127, %p128
    %p131 = scmp.ne.s32.totalorder %s114, %s130
    %p132 = scmp.eq.s32.totalorder %s16, 0
    %p133 = por %p131, %p132
    %s134 = ssub.s32 %s17, %s29
    %p135 = scmp.eq.s32.totalorder %s134, 0
    %s137 = sadd.s32 %s136, 1
    %s138 = scalar_select %p135, %s136, %s137
    %p141 = pneg %p135
    %p142 = scmp.eq.s32.totalorder %s10, 1
    %p143 = por %p141, %p142
    %p144 = scmp.ne.s32.totalorder %s136, %s139
    %p145 = scmp.eq.s32.totalorder %s10, 0
    %p146 = por %p144, %p145
    %p147 = scmp.ne.s32.totalorder %s136, %s139
    %p148 = scmp.eq.s32.totalorder %s15, 1
    %p149 = por %p147, %p148
    %p150 = scmp.ne.s32.totalorder %s139, %s140
    %p151 = scmp.eq.s32.totalorder %s15, 0
    %p152 = por %p150, %p151
    %p153 = scmp.ne.s32.totalorder %s139, %s140
    %p154 = scmp.eq.s32.totalorder %s16, 1
    %p155 = por %p153, %p154
    %p157 = scmp.ne.s32.totalorder %s140, %s156
    %p158 = scmp.eq.s32.totalorder %s16, 0
    %p159 = por %p157, %p158
    %p160 = scmp.le.s32.totalorder 1, %s10
    %p161 = scmp.lt.s32.totalorder %s10, 3
    %p162 = pnand %p160, %p161
    %p163 = pneg %p162
    // Predicated region
    $region9: #{lstm_model_forward.1} parent=5 // pred_check
      _
    $region10: #{lstm_model_forward.1} parent=5 // pred_check_branch
      %165 = sbr.rel (%p162) target = $region12
    $region11: #{lstm_model_forward.1} parent=5 // pred_region
      %s166 = ssub.s32 %s10, 1
      // Predicated region
      $region13: #{lstm_model_forward.1} parent=11 // pred_check
        %p167 = pneg %p48
      $region14: #{lstm_model_forward.1} parent=11 // pred_check_branch
        %169 = sbr.rel (%p167) target = $region16
      $region15: #{lstm_model_forward.1} parent=11 // pred_region
        %p170 = scmp.lt.s32.totalorder %s19, 0
        %s171 = scalar_select %p170, %s19, 0
        %s172 = smul.addr %s171, 4
        %s173 = smul.addr %s172, 8
        %s174 = scalar_lea.vmem %s0, %s173
      $region16: #{lstm_model_forward.1} parent=11 // pred_fallthru
        _
    $region12: #{lstm_model_forward.1} parent=5 // pred_fallthru
      _
    %p175 = scmp.lt.s32.totalorder %s10, 2
    // Predicated region
    $region17: #{lstm_model_forward.1} parent=5 // pred_check
      %p176 = pneg %p175
    $region18: #{lstm_model_forward.1} parent=5 // pred_check_branch
      %178 = sbr.rel (%p176) target = $region20
    $region19: #{lstm_model_forward.1} parent=5 // pred_region
      // Predicated region
      $region21: #{lstm_model_forward.1} parent=19 // pred_check
        %p179 = pneg %p68
      $region22: #{lstm_model_forward.1} parent=19 // pred_check_branch
        %181 = sbr.rel (%p179) target = $region24
      $region23: #{lstm_model_forward.1} parent=19 // pred_region
        %p182 = scmp.lt.s32.totalorder %s18, 1
        %s183 = scalar_select %p182, %s18, 1
        %s184 = smul.addr %s183, 64
        %s185 = smul.addr %s184, 4
        %s186 = scalar_lea.vmem %s1, %s185
      $region24: #{lstm_model_forward.1} parent=19 // pred_fallthru
        _
      // Predicated region
      $region25: #{lstm_model_forward.1} parent=19 // pred_check
        %p187 = pneg %p94
      $region26: #{lstm_model_forward.1} parent=19 // pred_check_branch
        %189 = sbr.rel (%p187) target = $region28
      $region27: #{lstm_model_forward.1} parent=19 // pred_region
        %p190 = scmp.lt.s32.totalorder %s18, 1
        %s191 = scalar_select %p190, %s18, 1
        %s192 = smul.addr %s191, 64
        %s193 = smul.addr %s192, 4
        %s194 = scalar_lea.vmem %s2, %s193
      $region28: #{lstm_model_forward.1} parent=19 // pred_fallthru
        _
      // Predicated region
      $region29: #{lstm_model_forward.1} parent=19 // pred_check
        %p195 = pneg %p120
      $region30: #{lstm_model_forward.1} parent=19 // pred_check_branch
        %197 = sbr.rel (%p195) target = $region32
      $region31: #{lstm_model_forward.1} parent=19 // pred_region
        %p198 = scmp.lt.s32.totalorder %s18, 1
        %s199 = scalar_select %p198, %s18, 1
        %s200 = smul.addr %s199, 4
        %s201 = scalar_lea.vmem %s3, %s200
      $region32: #{lstm_model_forward.1} parent=19 // pred_fallthru
        _
    $region20: #{lstm_model_forward.1} parent=5 // pred_fallthru
      _
    %p202 = scmp.le.s32.totalorder 1, %s10
    %p203 = scmp.lt.s32.totalorder %s10, 3
    %p204 = pnand %p202, %p203
    %p205 = pneg %p204
    // Predicated region
    $region33: #{lstm_model_forward.1} parent=5 // pred_check
      _
    $region34: #{lstm_model_forward.1} parent=5 // pred_check_branch
      %207 = sbr.rel (%p204) target = $region36
    $region35: #{lstm_model_forward.1} parent=5 // pred_region
      %s208 = ssub.s32 %s10, 1
      %p209 = scmp.lt.s32.totalorder %s19, 0
      %s210 = scalar_select %p209, %s19, 0
      %s211 = smul.addr %s210, 4
      %s212 = smul.addr %s211, 8
      %s213 = scalar_lea.vmem %s0, %s212
      %p214 = pneg %p48
      %p215 = pneg %p45
      %p216 = scmp.lt.s32.totalorder %s20, 1
      %s217 = scalar_select %p216, %s20, 1
      %s218 = smul.addr %s217, 64
      %s219 = smul.addr %s218, 4
      %s220 = scalar_lea.vmem %s1, %s219
      %p221 = pneg %p74
      %p222 = pneg %p71
      %p223 = scmp.lt.s32.totalorder %s20, 1
      %s224 = scalar_select %p223, %s20, 1
      %s225 = smul.addr %s224, 64
      %s226 = smul.addr %s225, 4
      %s227 = scalar_lea.vmem %s2, %s226
      %p228 = pneg %p100
      %p229 = pneg %p97
      %p230 = scmp.lt.s32.totalorder %s20, 1
      %s231 = scalar_select %p230, %s20, 1
      %s232 = smul.addr %s231, 4
      %s233 = scalar_lea.vmem %s3, %s232
      %p234 = pneg %p126
      %p235 = pneg %p123
      %p236 = pneg %p152
      %p237 = pneg %p149
      %p238 = scmp.lt.s32.totalorder %s19, 0
      %s239 = scalar_select %p238, %s19, 0
      %s240 = smul.addr %s239, 8
      %s241 = scalar_lea.vmem %s4, %s240
      %p242 = scmp.lt.s32.totalorder %s19, 0
      %s243 = scalar_select %p242, %s19, 0
      %s244 = smul.addr %s243, 4
      %s245 = smul.addr %s244, 8
      %s246 = scalar_lea.vmem %s0, %s245
      %p247 = scmp.lt.s32.totalorder %s20, 1
      %s248 = scalar_select %p247, %s20, 1
      %s249 = smul.addr %s248, 64
      %s250 = smul.addr %s249, 4
      %s251 = scalar_lea.vmem %s1, %s250
      %p252 = scmp.lt.s32.totalorder %s20, 1
      %s253 = scalar_select %p252, %s20, 1
      %s254 = smul.addr %s253, 64
      %s255 = smul.addr %s254, 4
      %s256 = scalar_lea.vmem %s2, %s255
      %p257 = scmp.lt.s32.totalorder %s20, 1
      %s258 = scalar_select %p257, %s20, 1
      %s259 = smul.addr %s258, 4
      %s260 = scalar_lea.vmem %s3, %s259
      %p261 = scmp.lt.s32.totalorder %s19, 0
      %s262 = scalar_select %p261, %s19, 0
      %s263 = smul.addr %s262, 8
      %s264 = scalar_lea.vmem %s4, %s263
      %p266 = scmp.eq.s32.totalorder %s20, 0
      // Predicated region
      $region37: #{lstm_model_forward.1} parent=35 // pred_check
        %p267 = pneg %p266
      $region38: #{lstm_model_forward.1} parent=35 // pred_check_branch
        %269 = sbr.rel (%p267) target = $region40
      $region39: #{lstm_model_forward.1} parent=35 // pred_region
        %v270 = vld [vmem:[%s246] sm:$0xff]
        %v271 = vld [vmem:[%s246 + $0x8] sm:$0xff]
        %v272 = vld [vmem:[%s246 + $0x10] sm:$0xff]
        %v273 = vld [vmem:[%s246 + $0x18] sm:$0xff]
        %v274 = vld [vmem:[%s246 + $0x20] sm:$0xff]
        %v275 = vld [vmem:[%s246 + $0x28] sm:$0xff]
        %v276 = vld [vmem:[%s246 + $0x30] sm:$0xff]
        %v277 = vld [vmem:[%s246 + $0x38] sm:$0xff]
        %v278 = vld [vmem:[%s246 + $0x40] sm:$0xff]
        %v279 = vld [vmem:[%s246 + $0x48] sm:$0xff]
        %v280 = vld [vmem:[%s246 + $0x50] sm:$0xff]
        %v281 = vld [vmem:[%s246 + $0x58] sm:$0xff]
        %v282 = vld [vmem:[%s246 + $0x60] sm:$0xff]
        %v283 = vld [vmem:[%s246 + $0x68] sm:$0xff]
        %v284 = vld [vmem:[%s246 + $0x70] sm:$0xff]
        %v285 = vld [vmem:[%s246 + $0x78] sm:$0xff]
        %v286 = vld [vmem:[%s246 + $0x80] sm:$0xff]
        %v287 = vld [vmem:[%s246 + $0x88] sm:$0xff]
        %v288 = vld [vmem:[%s246 + $0x90] sm:$0xff]
        %v289 = vld [vmem:[%s246 + $0x98] sm:$0xff]
        %v290 = vld [vmem:[%s246 + $0xa0] sm:$0xff]
        %v291 = vld [vmem:[%s246 + $0xa8] sm:$0xff]
        %v292 = vld [vmem:[%s246 + $0xb0] sm:$0xff]
        %v293 = vld [vmem:[%s246 + $0xb8] sm:$0xff]
        %v294 = vld [vmem:[%s246 + $0xc0] sm:$0xff]
        %v295 = vld [vmem:[%s246 + $0xc8] sm:$0xff]
        %v296 = vld [vmem:[%s246 + $0xd0] sm:$0xff]
        %v297 = vld [vmem:[%s246 + $0xd8] sm:$0xff]
        %v298 = vld [vmem:[%s246 + $0xe0] sm:$0xff]
        %v299 = vld [vmem:[%s246 + $0xe8] sm:$0xff]
        %v300 = vld [vmem:[%s246 + $0xf0] sm:$0xff]
        %v301 = vld [vmem:[%s246 + $0xf8] sm:$0xff]
        %302 = vst [vmem:[#allocation3] sm:$0xff] %v270
        %303 = vst [vmem:[#allocation3 + $0x8] sm:$0xff] %v271
        %304 = vst [vmem:[#allocation3 + $0x10] sm:$0xff] %v272
        %305 = vst [vmem:[#allocation3 + $0x18] sm:$0xff] %v273
        %306 = vst [vmem:[#allocation3 + $0x20] sm:$0xff] %v274
        %307 = vst [vmem:[#allocation3 + $0x28] sm:$0xff] %v275
        %308 = vst [vmem:[#allocation3 + $0x30] sm:$0xff] %v276
        %309 = vst [vmem:[#allocation3 + $0x38] sm:$0xff] %v277
        %310 = vst [vmem:[#allocation3 + $0x40] sm:$0xff] %v278
        %311 = vst [vmem:[#allocation3 + $0x48] sm:$0xff] %v279
        %312 = vst [vmem:[#allocation3 + $0x50] sm:$0xff] %v280
        %313 = vst [vmem:[#allocation3 + $0x58] sm:$0xff] %v281
        %314 = vst [vmem:[#allocation3 + $0x60] sm:$0xff] %v282
        %315 = vst [vmem:[#allocation3 + $0x68] sm:$0xff] %v283
        %316 = vst [vmem:[#allocation3 + $0x70] sm:$0xff] %v284
        %317 = vst [vmem:[#allocation3 + $0x78] sm:$0xff] %v285
        %318 = vst [vmem:[#allocation3 + $0x80] sm:$0xff] %v286
        %319 = vst [vmem:[#allocation3 + $0x88] sm:$0xff] %v287
        %320 = vst [vmem:[#allocation3 + $0x90] sm:$0xff] %v288
        %321 = vst [vmem:[#allocation3 + $0x98] sm:$0xff] %v289
        %322 = vst [vmem:[#allocation3 + $0xa0] sm:$0xff] %v290
        %323 = vst [vmem:[#allocation3 + $0xa8] sm:$0xff] %v291
        %324 = vst [vmem:[#allocation3 + $0xb0] sm:$0xff] %v292
        %325 = vst [vmem:[#allocation3 + $0xb8] sm:$0xff] %v293
        %326 = vst [vmem:[#allocation3 + $0xc0] sm:$0xff] %v294
        %327 = vst [vmem:[#allocation3 + $0xc8] sm:$0xff] %v295
        %328 = vst [vmem:[#allocation3 + $0xd0] sm:$0xff] %v296
        %329 = vst [vmem:[#allocation3 + $0xd8] sm:$0xff] %v297
        %330 = vst [vmem:[#allocation3 + $0xe0] sm:$0xff] %v298
        %331 = vst [vmem:[#allocation3 + $0xe8] sm:$0xff] %v299
        %332 = vst [vmem:[#allocation3 + $0xf0] sm:$0xff] %v300
        %333 = vst [vmem:[#allocation3 + $0xf8] sm:$0xff] %v301
      $region40: #{lstm_model_forward.1} parent=35 // pred_fallthru
        _
      %v334 = vld [vmem:[%s260] sm:$0xf]
      %p335 = scmp.gt.s32.totalorder %s20, 0
      // Predicated region
      $region41: #{lstm_model_forward.1} parent=35 // pred_check
        %p336 = pneg %p335
      $region42: #{lstm_model_forward.1} parent=35 // pred_check_branch
        %338 = sbr.rel (%p336) target = $region44
      $region43: #{lstm_model_forward.1} parent=35 // pred_region
        %v339 = vld [vmem:[#allocation2] sm:$0xff]
        %v340 = vld [vmem:[#allocation2 + $0x8] sm:$0xff]
        %v341 = vld [vmem:[#allocation2 + $0x10] sm:$0xff]
        %v342 = vld [vmem:[#allocation2 + $0x18] sm:$0xff]
        %v343 = vld [vmem:[#allocation2 + $0x20] sm:$0xff]
        %v344 = vld [vmem:[#allocation2 + $0x28] sm:$0xff]
        %v345 = vld [vmem:[#allocation2 + $0x30] sm:$0xff]
        %v346 = vld [vmem:[#allocation2 + $0x38] sm:$0xff]
        %v347 = vpack.c.bf16 %v340, %v339
        %v348 = vpack.c.bf16 %v342, %v341
        %v349 = vpack.c.bf16 %v344, %v343
        %v350 = vpack.c.bf16 %v346, %v345
        %v351 = vld [vmem:[%s251] sm:$0xff]
        %v352 = vld [vmem:[%s251 + $0x8] sm:$0xff]
        %v353 = vld [vmem:[%s251 + $0x10] sm:$0xff]
        %v354 = vld [vmem:[%s251 + $0x18] sm:$0xff]
        %v355 = vld [vmem:[%s251 + $0x20] sm:$0xff]
        %v356 = vld [vmem:[%s251 + $0x28] sm:$0xff]
        %v357 = vld [vmem:[%s251 + $0x30] sm:$0xff]
        %v358 = vld [vmem:[%s251 + $0x38] sm:$0xff]
        %v359 = vld [vmem:[%s251 + $0x40] sm:$0xff]
        %v360 = vld [vmem:[%s251 + $0x48] sm:$0xff]
        %v361 = vld [vmem:[%s251 + $0x50] sm:$0xff]
        %v362 = vld [vmem:[%s251 + $0x58] sm:$0xff]
        %v363 = vld [vmem:[%s251 + $0x60] sm:$0xff]
        %v364 = vld [vmem:[%s251 + $0x68] sm:$0xff]
        %v365 = vld [vmem:[%s251 + $0x70] sm:$0xff]
        %v366 = vld [vmem:[%s251 + $0x78] sm:$0xff]
        %v367 = vld [vmem:[%s251 + $0x80] sm:$0xff]
        %v368 = vld [vmem:[%s251 + $0x88] sm:$0xff]
        %v369 = vld [vmem:[%s251 + $0x90] sm:$0xff]
        %v370 = vld [vmem:[%s251 + $0x98] sm:$0xff]
        %v371 = vld [vmem:[%s251 + $0xa0] sm:$0xff]
        %v372 = vld [vmem:[%s251 + $0xa8] sm:$0xff]
        %v373 = vld [vmem:[%s251 + $0xb0] sm:$0xff]
        %v374 = vld [vmem:[%s251 + $0xb8] sm:$0xff]
        %v375 = vld [vmem:[%s251 + $0xc0] sm:$0xff]
        %v376 = vld [vmem:[%s251 + $0xc8] sm:$0xff]
        %v377 = vld [vmem:[%s251 + $0xd0] sm:$0xff]
        %v378 = vld [vmem:[%s251 + $0xd8] sm:$0xff]
        %v379 = vld [vmem:[%s251 + $0xe0] sm:$0xff]
        %v380 = vld [vmem:[%s251 + $0xe8] sm:$0xff]
        %v381 = vld [vmem:[%s251 + $0xf0] sm:$0xff]
        %v382 = vld [vmem:[%s251 + $0xf8] sm:$0xff]
        %v384 = vlaneseq
        %v385 = vshrl.u32 %v384, 7
        %v386 = vsub.s32 0, %v385
        %v387 = vrot.slane %v334, %v386
        %v388 = vlaneseq
        %v389 = vshrl.u32 %v388, 7
        %v390 = vsub.s32 1, %v389
        %v391 = vrot.slane %v334, %v390
        %v392 = vlaneseq
        %v393 = vshrl.u32 %v392, 7
        %v394 = vsub.s32 2, %v393
        %v395 = vrot.slane %v334, %v394
        %v396 = vlaneseq
        %v397 = vshrl.u32 %v396, 7
        %v398 = vsub.s32 3, %v397
        %v399 = vrot.slane %v334, %v398
        %v436 = vunpack.c.l.b16 %v351
        %v437 = vunpack.c.h.b16 %v351
        %v438 = vunpack.c.l.b16 %v352
        %v439 = vunpack.c.h.b16 %v352
        %v440 = vunpack.c.l.b16 %v353
        %v441 = vunpack.c.h.b16 %v353
        %v442 = vunpack.c.l.b16 %v354
        %v443 = vunpack.c.h.b16 %v354
        %v444 = vunpack.c.l.b16 %v355
        %v445 = vunpack.c.h.b16 %v355
        %v446 = vunpack.c.l.b16 %v356
        %v447 = vunpack.c.h.b16 %v356
        %v448 = vunpack.c.l.b16 %v357
        %v449 = vunpack.c.h.b16 %v357
        %v450 = vunpack.c.l.b16 %v358
        %v451 = vunpack.c.h.b16 %v358
        %v452 = vunpack.c.l.b16 %v359
        %v453 = vunpack.c.h.b16 %v359
        %v454 = vunpack.c.l.b16 %v360
        %v455 = vunpack.c.h.b16 %v360
        %v456 = vunpack.c.l.b16 %v361
        %v457 = vunpack.c.h.b16 %v361
        %v458 = vunpack.c.l.b16 %v362
        %v459 = vunpack.c.h.b16 %v362
        %v460 = vunpack.c.l.b16 %v363
        %v461 = vunpack.c.h.b16 %v363
        %v462 = vunpack.c.l.b16 %v364
        %v463 = vunpack.c.h.b16 %v364
        %v464 = vunpack.c.l.b16 %v365
        %v465 = vunpack.c.h.b16 %v365
        %v466 = vunpack.c.l.b16 %v366
        %v467 = vunpack.c.h.b16 %v366
        %v468 = vunpack.c.l.b16 %v367
        %v469 = vunpack.c.h.b16 %v367
        %v470 = vunpack.c.l.b16 %v368
        %v471 = vunpack.c.h.b16 %v368
        %v472 = vunpack.c.l.b16 %v369
        %v473 = vunpack.c.h.b16 %v369
        %v474 = vunpack.c.l.b16 %v370
        %v475 = vunpack.c.h.b16 %v370
        %v476 = vunpack.c.l.b16 %v371
        %v477 = vunpack.c.h.b16 %v371
        %v478 = vunpack.c.l.b16 %v372
        %v479 = vunpack.c.h.b16 %v372
        %v480 = vunpack.c.l.b16 %v373
        %v481 = vunpack.c.h.b16 %v373
        %v482 = vunpack.c.l.b16 %v374
        %v483 = vunpack.c.h.b16 %v374
        %v484 = vunpack.c.l.b16 %v375
        %v485 = vunpack.c.h.b16 %v375
        %v486 = vunpack.c.l.b16 %v376
        %v487 = vunpack.c.h.b16 %v376
        %v488 = vunpack.c.l.b16 %v377
        %v489 = vunpack.c.h.b16 %v377
        %v490 = vunpack.c.l.b16 %v378
        %v491 = vunpack.c.h.b16 %v378
        %v492 = vunpack.c.l.b16 %v379
        %v493 = vunpack.c.h.b16 %v379
        %v494 = vunpack.c.l.b16 %v380
        %v495 = vunpack.c.h.b16 %v380
        %v496 = vunpack.c.l.b16 %v381
        %v497 = vunpack.c.h.b16 %v381
        %v498 = vunpack.c.l.b16 %v382
        %v499 = vunpack.c.h.b16 %v382
        %v500 = vpack.c.b16 %v440, %v436
        %v501 = vpack.c.b16 %v441, %v437
        %v502 = vpack.c.b16 %v442, %v438
        %v503 = vpack.c.b16 %v443, %v439
        %v504 = vpack.c.b16 %v448, %v444
        %v505 = vpack.c.b16 %v449, %v445
        %v506 = vpack.c.b16 %v450, %v446
        %v507 = vpack.c.b16 %v451, %v447
        %v508 = vpack.c.b16 %v456, %v452
        %v509 = vpack.c.b16 %v457, %v453
        %v510 = vpack.c.b16 %v458, %v454
        %v511 = vpack.c.b16 %v459, %v455
        %v512 = vpack.c.b16 %v464, %v460
        %v513 = vpack.c.b16 %v465, %v461
        %v514 = vpack.c.b16 %v466, %v462
        %v515 = vpack.c.b16 %v467, %v463
        %v516 = vpack.c.b16 %v472, %v468
        %v517 = vpack.c.b16 %v473, %v469
        %v518 = vpack.c.b16 %v474, %v470
        %v519 = vpack.c.b16 %v475, %v471
        %v520 = vpack.c.b16 %v480, %v476
        %v521 = vpack.c.b16 %v481, %v477
        %v522 = vpack.c.b16 %v482, %v478
        %v523 = vpack.c.b16 %v483, %v479
        %v524 = vpack.c.b16 %v488, %v484
        %v525 = vpack.c.b16 %v489, %v485
        %v526 = vpack.c.b16 %v490, %v486
        %v527 = vpack.c.b16 %v491, %v487
        %v528 = vpack.c.b16 %v496, %v492
        %v529 = vpack.c.b16 %v497, %v493
        %v530 = vpack.c.b16 %v498, %v494
        %v531 = vpack.c.b16 %v499, %v495
        %564 = vmatprep.subr.bf16.mxu0 %v529
        %565 = vmatpush1.bf16.msra.mxu0 %v528
        %566 = vmatprep.subr.bf16.mxu0 %v525
        %567 = vmatpush1.bf16.msra.mxu0 %v524
        %568 = vmatprep.subr.bf16.mxu0 %v521
        %569 = vmatpush1.bf16.msra.mxu0 %v520
        %570 = vmatprep.subr.bf16.mxu0 %v517
        %571 = vmatpush1.bf16.msra.mxu0 %v516
        %572 = vmatprep.subr.bf16.mxu0 %v513
        %573 = vmatpush1.bf16.msra.mxu0 %v512
        %574 = vmatprep.subr.bf16.mxu0 %v509
        %575 = vmatpush1.bf16.msra.mxu0 %v508
        %576 = vmatprep.subr.bf16.mxu0 %v505
        %577 = vmatpush1.bf16.msra.mxu0 %v504
        %578 = vmatprep.subr.bf16.mxu0 %v501
        %579 = vmatpush1.bf16.msra.mxu0 %v500
        %580 = vmatprep.subr.bf16.mxu0 0
        %581 = vmatpush2.bf16.msra.mxu0 0
        %582 = vmatprep.subr.bf16.mxu0 0
        %583 = vmatpush2.bf16.msra.mxu0 0
        %584 = vmatprep.subr.bf16.mxu0 0
        %585 = vmatpush2.bf16.msra.mxu0 0
        %586 = vmatprep.subr.bf16.mxu0 0
        %587 = vmatpush2.bf16.msra.mxu0 0
        %588 = vmatprep.subr.bf16.mxu0 0
        %589 = vmatpush2.bf16.msra.mxu0 0
        %590 = vmatprep.subr.bf16.mxu0 0
        %591 = vmatpush2.bf16.msra.mxu0 0
        %592 = vmatprep.subr.bf16.mxu0 0
        %593 = vmatpush2.bf16.msra.mxu0 0
        %594 = vmatprep.subr.bf16.mxu0 0
        %595 = vmatpush2.bf16.msra.mxu0 0
        %596 = vmatprep.mubr.bf16.mxu0 0
        %597 = vmatmul.mubr.bf16.gmra.mxu0 %v347
        %v598 = vpop.f32.mrf.mxu0
        %v599 = vadd.f32 %v387, %v598
        %v600 = vpop.f32.mrf.mxu0
        %v601 = vadd.f32 %v391, %v600
        %v602 = vpop.f32.mrf.mxu0
        %v603 = vadd.f32 %v387, %v602
        %v604 = vpop.f32.mrf.mxu0
        %v605 = vadd.f32 %v391, %v604
        %606 = vmatprep.mubr.bf16.mxu0 0
        %607 = vmatmul.mubr.bf16.gmra.mxu0 %v348
        %v608 = vpop.f32.mrf.mxu0
        %v609 = vadd.f32 %v387, %v608
        %v610 = vpop.f32.mrf.mxu0
        %v611 = vadd.f32 %v391, %v610
        %v612 = vpop.f32.mrf.mxu0
        %v613 = vadd.f32 %v387, %v612
        %v614 = vpop.f32.mrf.mxu0
        %v615 = vadd.f32 %v391, %v614
        %616 = vmatprep.mubr.bf16.mxu0 0
        %617 = vmatmul.mubr.bf16.gmra.mxu0 %v349
        %v618 = vpop.f32.mrf.mxu0
        %v619 = vadd.f32 %v387, %v618
        %v620 = vpop.f32.mrf.mxu0
        %v621 = vadd.f32 %v391, %v620
        %v622 = vpop.f32.mrf.mxu0
        %v623 = vadd.f32 %v387, %v622
        %v624 = vpop.f32.mrf.mxu0
        %v625 = vadd.f32 %v391, %v624
        %626 = vmatprep.mubr.bf16.mxu0 0
        %627 = vmatmul.mubr.bf16.gmra.mxu0 %v350
        %v628 = vpop.f32.mrf.mxu0
        %v629 = vadd.f32 %v387, %v628
        %v630 = vpop.f32.mrf.mxu0
        %v631 = vadd.f32 %v391, %v630
        %v632 = vpop.f32.mrf.mxu0
        %v633 = vadd.f32 %v387, %v632
        %v634 = vpop.f32.mrf.mxu0
        %v635 = vadd.f32 %v391, %v634
        %636 = vdwg.mxu0
        %637 = vmatprep.subr.bf16.mxu0 %v531
        %638 = vmatpush1.bf16.msra.mxu0 %v530
        %639 = vmatprep.subr.bf16.mxu0 %v527
        %640 = vmatpush1.bf16.msra.mxu0 %v526
        %641 = vmatprep.subr.bf16.mxu0 %v523
        %642 = vmatpush1.bf16.msra.mxu0 %v522
        %643 = vmatprep.subr.bf16.mxu0 %v519
        %644 = vmatpush1.bf16.msra.mxu0 %v518
        %645 = vmatprep.subr.bf16.mxu0 %v515
        %646 = vmatpush1.bf16.msra.mxu0 %v514
        %647 = vmatprep.subr.bf16.mxu0 %v511
        %648 = vmatpush1.bf16.msra.mxu0 %v510
        %649 = vmatprep.subr.bf16.mxu0 %v507
        %650 = vmatpush1.bf16.msra.mxu0 %v506
        %651 = vmatprep.subr.bf16.mxu0 %v503
        %652 = vmatpush1.bf16.msra.mxu0 %v502
        %653 = vmatprep.subr.bf16.mxu0 0
        %654 = vmatpush2.bf16.msra.mxu0 0
        %655 = vmatprep.subr.bf16.mxu0 0
        %656 = vmatpush2.bf16.msra.mxu0 0
        %657 = vmatprep.subr.bf16.mxu0 0
        %658 = vmatpush2.bf16.msra.mxu0 0
        %659 = vmatprep.subr.bf16.mxu0 0
        %660 = vmatpush2.bf16.msra.mxu0 0
        %661 = vmatprep.subr.bf16.mxu0 0
        %662 = vmatpush2.bf16.msra.mxu0 0
        %663 = vmatprep.subr.bf16.mxu0 0
        %664 = vmatpush2.bf16.msra.mxu0 0
        %665 = vmatprep.subr.bf16.mxu0 0
        %666 = vmatpush2.bf16.msra.mxu0 0
        %667 = vmatprep.subr.bf16.mxu0 0
        %668 = vmatpush2.bf16.msra.mxu0 0
        %669 = vmatprep.mubr.bf16.mxu0 0
        %670 = vmatmul.mubr.bf16.gmra.mxu0 %v347
        %v671 = vpop.f32.mrf.mxu0
        %v672 = vadd.f32 %v395, %v671
        %v673 = vpop.f32.mrf.mxu0
        %v674 = vadd.f32 %v399, %v673
        %v675 = vpop.f32.mrf.mxu0
        %v676 = vadd.f32 %v395, %v675
        %v677 = vpop.f32.mrf.mxu0
        %v678 = vadd.f32 %v399, %v677
        %679 = vmatprep.mubr.bf16.mxu0 0
        %680 = vmatmul.mubr.bf16.gmra.mxu0 %v348
        %v681 = vpop.f32.mrf.mxu0
        %v682 = vadd.f32 %v395, %v681
        %v683 = vpop.f32.mrf.mxu0
        %v684 = vadd.f32 %v399, %v683
        %v685 = vpop.f32.mrf.mxu0
        %v686 = vadd.f32 %v395, %v685
        %v687 = vpop.f32.mrf.mxu0
        %v688 = vadd.f32 %v399, %v687
        %689 = vmatprep.mubr.bf16.mxu0 0
        %690 = vmatmul.mubr.bf16.gmra.mxu0 %v349
        %v691 = vpop.f32.mrf.mxu0
        %v692 = vadd.f32 %v395, %v691
        %v693 = vpop.f32.mrf.mxu0
        %v694 = vadd.f32 %v399, %v693
        %v695 = vpop.f32.mrf.mxu0
        %v696 = vadd.f32 %v395, %v695
        %v697 = vpop.f32.mrf.mxu0
        %v698 = vadd.f32 %v399, %v697
        %699 = vmatprep.mubr.bf16.mxu0 0
        %700 = vmatmul.mubr.bf16.gmra.mxu0 %v350
        %v701 = vpop.f32.mrf.mxu0
        %v702 = vadd.f32 %v395, %v701
        %v703 = vpop.f32.mrf.mxu0
        %v704 = vadd.f32 %v399, %v703
        %v705 = vpop.f32.mrf.mxu0
        %v706 = vadd.f32 %v395, %v705
        %v707 = vpop.f32.mrf.mxu0
        %v708 = vadd.f32 %v399, %v707
        %709 = vdwg.mxu0
        %710 = vst [vmem:[#allocation3] sm:$0xff] %v599
        %711 = vst [vmem:[#allocation3 + $0x8] sm:$0xff] %v601
        %712 = vst [vmem:[#allocation3 + $0x10] sm:$0xff] %v672
        %713 = vst [vmem:[#allocation3 + $0x18] sm:$0xff] %v674
        %714 = vst [vmem:[#allocation3 + $0x20] sm:$0xff] %v603
        %715 = vst [vmem:[#allocation3 + $0x28] sm:$0xff] %v605
        %716 = vst [vmem:[#allocation3 + $0x30] sm:$0xff] %v676
        %717 = vst [vmem:[#allocation3 + $0x38] sm:$0xff] %v678
        %718 = vst [vmem:[#allocation3 + $0x40] sm:$0xff] %v609
        %719 = vst [vmem:[#allocation3 + $0x48] sm:$0xff] %v611
        %720 = vst [vmem:[#allocation3 + $0x50] sm:$0xff] %v682
        %721 = vst [vmem:[#allocation3 + $0x58] sm:$0xff] %v684
        %722 = vst [vmem:[#allocation3 + $0x60] sm:$0xff] %v613
        %723 = vst [vmem:[#allocation3 + $0x68] sm:$0xff] %v615
        %724 = vst [vmem:[#allocation3 + $0x70] sm:$0xff] %v686
        %725 = vst [vmem:[#allocation3 + $0x78] sm:$0xff] %v688
        %726 = vst [vmem:[#allocation3 + $0x80] sm:$0xff] %v619
        %727 = vst [vmem:[#allocation3 + $0x88] sm:$0xff] %v621
        %728 = vst [vmem:[#allocation3 + $0x90] sm:$0xff] %v692
        %729 = vst [vmem:[#allocation3 + $0x98] sm:$0xff] %v694
        %730 = vst [vmem:[#allocation3 + $0xa0] sm:$0xff] %v623
        %731 = vst [vmem:[#allocation3 + $0xa8] sm:$0xff] %v625
        %732 = vst [vmem:[#allocation3 + $0xb0] sm:$0xff] %v696
        %733 = vst [vmem:[#allocation3 + $0xb8] sm:$0xff] %v698
        %734 = vst [vmem:[#allocation3 + $0xc0] sm:$0xff] %v629
        %735 = vst [vmem:[#allocation3 + $0xc8] sm:$0xff] %v631
        %736 = vst [vmem:[#allocation3 + $0xd0] sm:$0xff] %v702
        %737 = vst [vmem:[#allocation3 + $0xd8] sm:$0xff] %v704
        %738 = vst [vmem:[#allocation3 + $0xe0] sm:$0xff] %v633
        %739 = vst [vmem:[#allocation3 + $0xe8] sm:$0xff] %v635
        %740 = vst [vmem:[#allocation3 + $0xf0] sm:$0xff] %v706
        %741 = vst [vmem:[#allocation3 + $0xf8] sm:$0xff] %v708
      $region44: #{lstm_model_forward.1} parent=35 // pred_fallthru
        _
      %742 = vst [vmem:[#allocation4] sm:$0xff] 0.0
      %743 = vst [vmem:[#allocation5] sm:$0xff] 0.0
      %v744 = vld [vmem:[%s256] sm:$0xff]
      %v745 = vld [vmem:[%s256 + $0x8] sm:$0xff]
      %v746 = vld [vmem:[%s256 + $0x10] sm:$0xff]
      %v747 = vld [vmem:[%s256 + $0x18] sm:$0xff]
      %v748 = vld [vmem:[%s256 + $0x20] sm:$0xff]
      %v749 = vld [vmem:[%s256 + $0x28] sm:$0xff]
      %v750 = vld [vmem:[%s256 + $0x30] sm:$0xff]
      %v751 = vld [vmem:[%s256 + $0x38] sm:$0xff]
      %v752 = vld [vmem:[%s256 + $0x40] sm:$0xff]
      %v753 = vld [vmem:[%s256 + $0x48] sm:$0xff]
      %v754 = vld [vmem:[%s256 + $0x50] sm:$0xff]
      %v755 = vld [vmem:[%s256 + $0x58] sm:$0xff]
      %v756 = vld [vmem:[%s256 + $0x60] sm:$0xff]
      %v757 = vld [vmem:[%s256 + $0x68] sm:$0xff]
      %v758 = vld [vmem:[%s256 + $0x70] sm:$0xff]
      %v759 = vld [vmem:[%s256 + $0x78] sm:$0xff]
      %v760 = vld [vmem:[%s256 + $0x80] sm:$0xff]
      %v761 = vld [vmem:[%s256 + $0x88] sm:$0xff]
      %v762 = vld [vmem:[%s256 + $0x90] sm:$0xff]
      %v763 = vld [vmem:[%s256 + $0x98] sm:$0xff]
      %v764 = vld [vmem:[%s256 + $0xa0] sm:$0xff]
      %v765 = vld [vmem:[%s256 + $0xa8] sm:$0xff]
      %v766 = vld [vmem:[%s256 + $0xb0] sm:$0xff]
      %v767 = vld [vmem:[%s256 + $0xb8] sm:$0xff]
      %v768 = vld [vmem:[%s256 + $0xc0] sm:$0xff]
      %v769 = vld [vmem:[%s256 + $0xc8] sm:$0xff]
      %v770 = vld [vmem:[%s256 + $0xd0] sm:$0xff]
      %v771 = vld [vmem:[%s256 + $0xd8] sm:$0xff]
      %v772 = vld [vmem:[%s256 + $0xe0] sm:$0xff]
      %v773 = vld [vmem:[%s256 + $0xe8] sm:$0xff]
      %v774 = vld [vmem:[%s256 + $0xf0] sm:$0xff]
      %v775 = vld [vmem:[%s256 + $0xf8] sm:$0xff]
      %v776 = vld [vmem:[#allocation4] sm:$0xff]
      %v777 = vld [vmem:[#allocation5] sm:$0xff]
      %v778 = vld [vmem:[#allocation3] sm:$0xff]
      %v779 = vld [vmem:[#allocation3 + $0x8] sm:$0xff]
      %v780 = vld [vmem:[#allocation3 + $0x10] sm:$0xff]
      %v781 = vld [vmem:[#allocation3 + $0x18] sm:$0xff]
      %v782 = vpack.c.bf16 %v776, %v776
      %v815 = vunpack.c.l.b16 %v744
      %v816 = vunpack.c.h.b16 %v744
      %v817 = vunpack.c.l.b16 %v745
      %v818 = vunpack.c.h.b16 %v745
      %v819 = vunpack.c.l.b16 %v746
      %v820 = vunpack.c.h.b16 %v746
      %v821 = vunpack.c.l.b16 %v747
      %v822 = vunpack.c.h.b16 %v747
      %v823 = vunpack.c.l.b16 %v748
      %v824 = vunpack.c.h.b16 %v748
      %v825 = vunpack.c.l.b16 %v749
      %v826 = vunpack.c.h.b16 %v749
      %v827 = vunpack.c.l.b16 %v750
      %v828 = vunpack.c.h.b16 %v750
      %v829 = vunpack.c.l.b16 %v751
      %v830 = vunpack.c.h.b16 %v751
      %v831 = vunpack.c.l.b16 %v752
      %v832 = vunpack.c.h.b16 %v752
      %v833 = vunpack.c.l.b16 %v753
      %v834 = vunpack.c.h.b16 %v753
      %v835 = vunpack.c.l.b16 %v754
      %v836 = vunpack.c.h.b16 %v754
      %v837 = vunpack.c.l.b16 %v755
      %v838 = vunpack.c.h.b16 %v755
      %v839 = vunpack.c.l.b16 %v756
      %v840 = vunpack.c.h.b16 %v756
      %v841 = vunpack.c.l.b16 %v757
      %v842 = vunpack.c.h.b16 %v757
      %v843 = vunpack.c.l.b16 %v758
      %v844 = vunpack.c.h.b16 %v758
      %v845 = vunpack.c.l.b16 %v759
      %v846 = vunpack.c.h.b16 %v759
      %v847 = vunpack.c.l.b16 %v760
      %v848 = vunpack.c.h.b16 %v760
      %v849 = vunpack.c.l.b16 %v761
      %v850 = vunpack.c.h.b16 %v761
      %v851 = vunpack.c.l.b16 %v762
      %v852 = vunpack.c.h.b16 %v762
      %v853 = vunpack.c.l.b16 %v763
      %v854 = vunpack.c.h.b16 %v763
      %v855 = vunpack.c.l.b16 %v764
      %v856 = vunpack.c.h.b16 %v764
      %v857 = vunpack.c.l.b16 %v765
      %v858 = vunpack.c.h.b16 %v765
      %v859 = vunpack.c.l.b16 %v766
      %v860 = vunpack.c.h.b16 %v766
      %v861 = vunpack.c.l.b16 %v767
      %v862 = vunpack.c.h.b16 %v767
      %v863 = vunpack.c.l.b16 %v768
      %v864 = vunpack.c.h.b16 %v768
      %v865 = vunpack.c.l.b16 %v769
      %v866 = vunpack.c.h.b16 %v769
      %v867 = vunpack.c.l.b16 %v770
      %v868 = vunpack.c.h.b16 %v770
      %v869 = vunpack.c.l.b16 %v771
      %v870 = vunpack.c.h.b16 %v771
      %v871 = vunpack.c.l.b16 %v772
      %v872 = vunpack.c.h.b16 %v772
      %v873 = vunpack.c.l.b16 %v773
      %v874 = vunpack.c.h.b16 %v773
      %v875 = vunpack.c.l.b16 %v774
      %v876 = vunpack.c.h.b16 %v774
      %v877 = vunpack.c.l.b16 %v775
      %v878 = vunpack.c.h.b16 %v775
      %v879 = vpack.c.b16 %v819, %v815
      %v880 = vpack.c.b16 %v820, %v816
      %v881 = vpack.c.b16 %v821, %v817
      %v882 = vpack.c.b16 %v822, %v818
      %v883 = vpack.c.b16 %v827, %v823
      %v884 = vpack.c.b16 %v828, %v824
      %v885 = vpack.c.b16 %v829, %v825
      %v886 = vpack.c.b16 %v830, %v826
      %v887 = vpack.c.b16 %v835, %v831
      %v888 = vpack.c.b16 %v836, %v832
      %v889 = vpack.c.b16 %v837, %v833
      %v890 = vpack.c.b16 %v838, %v834
      %v891 = vpack.c.b16 %v843, %v839
      %v892 = vpack.c.b16 %v844, %v840
      %v893 = vpack.c.b16 %v845, %v841
      %v894 = vpack.c.b16 %v846, %v842
      %v895 = vpack.c.b16 %v851, %v847
      %v896 = vpack.c.b16 %v852, %v848
      %v897 = vpack.c.b16 %v853, %v849
      %v898 = vpack.c.b16 %v854, %v850
      %v899 = vpack.c.b16 %v859, %v855
      %v900 = vpack.c.b16 %v860, %v856
      %v901 = vpack.c.b16 %v861, %v857
      %v902 = vpack.c.b16 %v862, %v858
      %v903 = vpack.c.b16 %v867, %v863
      %v904 = vpack.c.b16 %v868, %v864
      %v905 = vpack.c.b16 %v869, %v865
      %v906 = vpack.c.b16 %v870, %v866
      %v907 = vpack.c.b16 %v875, %v871
      %v908 = vpack.c.b16 %v876, %v872
      %v909 = vpack.c.b16 %v877, %v873
      %v910 = vpack.c.b16 %v878, %v874
      %943 = vmatprep.subr.bf16.mxu0 %v908
      %944 = vmatpush1.bf16.msra.mxu0 %v907
      %945 = vmatprep.subr.bf16.mxu0 %v904
      %946 = vmatpush1.bf16.msra.mxu0 %v903
      %947 = vmatprep.subr.bf16.mxu0 %v900
      %948 = vmatpush1.bf16.msra.mxu0 %v899
      %949 = vmatprep.subr.bf16.mxu0 %v896
      %950 = vmatpush1.bf16.msra.mxu0 %v895
      %951 = vmatprep.subr.bf16.mxu0 %v892
      %952 = vmatpush1.bf16.msra.mxu0 %v891
      %953 = vmatprep.subr.bf16.mxu0 %v888
      %954 = vmatpush1.bf16.msra.mxu0 %v887
      %955 = vmatprep.subr.bf16.mxu0 %v884
      %956 = vmatpush1.bf16.msra.mxu0 %v883
      %957 = vmatprep.subr.bf16.mxu0 %v880
      %958 = vmatpush1.bf16.msra.mxu0 %v879
      %959 = vmatprep.subr.bf16.mxu0 0
      %960 = vmatpush2.bf16.msra.mxu0 0
      %961 = vmatprep.subr.bf16.mxu0 0
      %962 = vmatpush2.bf16.msra.mxu0 0
      %963 = vmatprep.subr.bf16.mxu0 0
      %964 = vmatpush2.bf16.msra.mxu0 0
      %965 = vmatprep.subr.bf16.mxu0 0
      %966 = vmatpush2.bf16.msra.mxu0 0
      %967 = vmatprep.subr.bf16.mxu0 0
      %968 = vmatpush2.bf16.msra.mxu0 0
      %969 = vmatprep.subr.bf16.mxu0 0
      %970 = vmatpush2.bf16.msra.mxu0 0
      %971 = vmatprep.subr.bf16.mxu0 0
      %972 = vmatpush2.bf16.msra.mxu0 0
      %973 = vmatprep.subr.bf16.mxu0 0
      %974 = vmatpush2.bf16.msra.mxu0 0
      %975 = vmatprep.mubr.bf16.mxu0 0
      %976 = vmatmul.mubr.bf16.gmra.mxu0 %v782
      %v977 = vpop.f32.mrf.mxu0
      %v978 = vadd.f32 0.0, %v977
      %v979 = vpop.f32.mrf.mxu0
      %v980 = vadd.f32 0.0, %v979
      %v981 = vpop.f32.mrf.mxu0
      %v982 = vpop.f32.mrf.mxu0
      %983 = vdwg.mxu0
      %984 = vmatprep.subr.bf16.mxu0 %v910
      %985 = vmatpush1.bf16.msra.mxu0 %v909
      %986 = vmatprep.subr.bf16.mxu0 %v906
      %987 = vmatpush1.bf16.msra.mxu0 %v905
      %988 = vmatprep.subr.bf16.mxu0 %v902
      %989 = vmatpush1.bf16.msra.mxu0 %v901
      %990 = vmatprep.subr.bf16.mxu0 %v898
      %991 = vmatpush1.bf16.msra.mxu0 %v897
      %992 = vmatprep.subr.bf16.mxu0 %v894
      %993 = vmatpush1.bf16.msra.mxu0 %v893
      %994 = vmatprep.subr.bf16.mxu0 %v890
      %995 = vmatpush1.bf16.msra.mxu0 %v889
      %996 = vmatprep.subr.bf16.mxu0 %v886
      %997 = vmatpush1.bf16.msra.mxu0 %v885
      %998 = vmatprep.subr.bf16.mxu0 %v882
      %999 = vmatpush1.bf16.msra.mxu0 %v881
      %1000 = vmatprep.subr.bf16.mxu0 0
      %1001 = vmatpush2.bf16.msra.mxu0 0
      %1002 = vmatprep.subr.bf16.mxu0 0
      %1003 = vmatpush2.bf16.msra.mxu0 0
      %1004 = vmatprep.subr.bf16.mxu0 0
      %1005 = vmatpush2.bf16.msra.mxu0 0
      %1006 = vmatprep.subr.bf16.mxu0 0
      %1007 = vmatpush2.bf16.msra.mxu0 0
      %1008 = vmatprep.subr.bf16.mxu0 0
      %1009 = vmatpush2.bf16.msra.mxu0 0
      %1010 = vmatprep.subr.bf16.mxu0 0
      %1011 = vmatpush2.bf16.msra.mxu0 0
      %1012 = vmatprep.subr.bf16.mxu0 0
      %1013 = vmatpush2.bf16.msra.mxu0 0
      %1014 = vmatprep.subr.bf16.mxu0 0
      %1015 = vmatpush2.bf16.msra.mxu0 0
      %1016 = vmatprep.mubr.bf16.mxu0 0
      %1017 = vmatmul.mubr.bf16.gmra.mxu0 %v782
      %v1018 = vpop.f32.mrf.mxu0
      %v1019 = vadd.f32 0.0, %v1018
      %v1020 = vpop.f32.mrf.mxu0
      %v1021 = vadd.f32 0.0, %v1020
      %v1022 = vpop.f32.mrf.mxu0
      %v1023 = vpop.f32.mrf.mxu0
      %1024 = vdwg.mxu0
      %v1025 = vadd.f32 %v778, %v978
      %v1026 = vadd.f32 %v779, %v980
      %v1027 = vadd.f32 %v780, %v1019
      %v1028 = vadd.f32 %v781, %v1021
      %v1029 = vxor.u32 %v1025, 2147483648
      %v1030 = vmul.f32 %v1029, 1.442695
      %v1031 = vpow.pop %v1030
      %v1032 = vadd.f32 %v1031, 1.0
      %v1033 = vrcp.pop %v1032
      %v1034 = vmul.f32 1.0, %v1033
      %v1035 = vxor.u32 %v1026, 2147483648
      %v1036 = vmul.f32 %v1035, 1.442695
      %v1037 = vpow.pop %v1036
      %v1038 = vadd.f32 %v1037, 1.0
      %v1039 = vrcp.pop %v1038
      %v1040 = vmul.f32 1.0, %v1039
      %v1041 = vtanh.pop %v1027
      %v1042 = vxor.u32 %v1028, 2147483648
      %v1043 = vmul.f32 %v1042, 1.442695
      %v1044 = vpow.pop %v1043
      %v1045 = vadd.f32 %v1044, 1.0
      %v1046 = vrcp.pop %v1045
      %v1047 = vmul.f32 1.0, %v1046
      %v1048 = vmul.f32 %v1040, %v777
      %v1049 = vmul.f32 %v1034, %v1041
      %v1050 = vadd.f32 %v1048, %v1049
      %v1051 = vtanh.pop %v1050
      %v1052 = vmul.f32 %v1047, %v1051
      %1053 = vst [vmem:[#allocation4] sm:$0xff] %v1052
      %1054 = vst [vmem:[#allocation5] sm:$0xff] %v1050
      %1055 = vst [vmem:[#allocation2] sm:$0xff] %v1052
      %v1056 = vld [vmem:[#allocation4] sm:$0xff]
      %v1057 = vld [vmem:[#allocation5] sm:$0xff]
      %s1058 = scalar_lea.vmem [#allocation3], 32
      %v1059 = vld [vmem:[%s1058] sm:$0xff]
      %v1060 = vld [vmem:[%s1058 + $0x8] sm:$0xff]
      %v1061 = vld [vmem:[%s1058 + $0x10] sm:$0xff]
      %v1062 = vld [vmem:[%s1058 + $0x18] sm:$0xff]
      %v1063 = vpack.c.bf16 %v1056, %v1056
      %1064 = vmatprep.subr.bf16.mxu0 %v908
      %1065 = vmatpush1.bf16.msra.mxu0 %v907
      %1066 = vmatprep.subr.bf16.mxu0 %v904
      %1067 = vmatpush1.bf16.msra.mxu0 %v903
      %1068 = vmatprep.subr.bf16.mxu0 %v900
      %1069 = vmatpush1.bf16.msra.mxu0 %v899
      %1070 = vmatprep.subr.bf16.mxu0 %v896
      %1071 = vmatpush1.bf16.msra.mxu0 %v895
      %1072 = vmatprep.subr.bf16.mxu0 %v892
      %1073 = vmatpush1.bf16.msra.mxu0 %v891
      %1074 = vmatprep.subr.bf16.mxu0 %v888
      %1075 = vmatpush1.bf16.msra.mxu0 %v887
      %1076 = vmatprep.subr.bf16.mxu0 %v884
      %1077 = vmatpush1.bf16.msra.mxu0 %v883
      %1078 = vmatprep.subr.bf16.mxu0 %v880
      %1079 = vmatpush1.bf16.msra.mxu0 %v879
      %1080 = vmatprep.subr.bf16.mxu0 0
      %1081 = vmatpush2.bf16.msra.mxu0 0
      %1082 = vmatprep.subr.bf16.mxu0 0
      %1083 = vmatpush2.bf16.msra.mxu0 0
      %1084 = vmatprep.subr.bf16.mxu0 0
      %1085 = vmatpush2.bf16.msra.mxu0 0
      %1086 = vmatprep.subr.bf16.mxu0 0
      %1087 = vmatpush2.bf16.msra.mxu0 0
      %1088 = vmatprep.subr.bf16.mxu0 0
      %1089 = vmatpush2.bf16.msra.mxu0 0
      %1090 = vmatprep.subr.bf16.mxu0 0
      %1091 = vmatpush2.bf16.msra.mxu0 0
      %1092 = vmatprep.subr.bf16.mxu0 0
      %1093 = vmatpush2.bf16.msra.mxu0 0
      %1094 = vmatprep.subr.bf16.mxu0 0
      %1095 = vmatpush2.bf16.msra.mxu0 0
      %1096 = vmatprep.mubr.bf16.mxu0 0
      %1097 = vmatmul.mubr.bf16.gmra.mxu0 %v1063
      %v1098 = vpop.f32.mrf.mxu0
      %v1099 = vadd.f32 0.0, %v1098
      %v1100 = vpop.f32.mrf.mxu0
      %v1101 = vadd.f32 0.0, %v1100
      %v1102 = vpop.f32.mrf.mxu0
      %v1103 = vpop.f32.mrf.mxu0
      %1104 = vdwg.mxu0
      %1105 = vmatprep.subr.bf16.mxu0 %v910
      %1106 = vmatpush1.bf16.msra.mxu0 %v909
      %1107 = vmatprep.subr.bf16.mxu0 %v906
      %1108 = vmatpush1.bf16.msra.mxu0 %v905
      %1109 = vmatprep.subr.bf16.mxu0 %v902
      %1110 = vmatpush1.bf16.msra.mxu0 %v901
      %1111 = vmatprep.subr.bf16.mxu0 %v898
      %1112 = vmatpush1.bf16.msra.mxu0 %v897
      %1113 = vmatprep.subr.bf16.mxu0 %v894
      %1114 = vmatpush1.bf16.msra.mxu0 %v893
      %1115 = vmatprep.subr.bf16.mxu0 %v890
      %1116 = vmatpush1.bf16.msra.mxu0 %v889
      %1117 = vmatprep.subr.bf16.mxu0 %v886
      %1118 = vmatpush1.bf16.msra.mxu0 %v885
      %1119 = vmatprep.subr.bf16.mxu0 %v882
      %1120 = vmatpush1.bf16.msra.mxu0 %v881
      %1121 = vmatprep.subr.bf16.mxu0 0
      %1122 = vmatpush2.bf16.msra.mxu0 0
      %1123 = vmatprep.subr.bf16.mxu0 0
      %1124 = vmatpush2.bf16.msra.mxu0 0
      %1125 = vmatprep.subr.bf16.mxu0 0
      %1126 = vmatpush2.bf16.msra.mxu0 0
      %1127 = vmatprep.subr.bf16.mxu0 0
      %1128 = vmatpush2.bf16.msra.mxu0 0
      %1129 = vmatprep.subr.bf16.mxu0 0
      %1130 = vmatpush2.bf16.msra.mxu0 0
      %1131 = vmatprep.subr.bf16.mxu0 0
      %1132 = vmatpush2.bf16.msra.mxu0 0
      %1133 = vmatprep.subr.bf16.mxu0 0
      %1134 = vmatpush2.bf16.msra.mxu0 0
      %1135 = vmatprep.subr.bf16.mxu0 0
      %1136 = vmatpush2.bf16.msra.mxu0 0
      %1137 = vmatprep.mubr.bf16.mxu0 0
      %1138 = vmatmul.mubr.bf16.gmra.mxu0 %v1063
      %v1139 = vpop.f32.mrf.mxu0
      %v1140 = vadd.f32 0.0, %v1139
      %v1141 = vpop.f32.mrf.mxu0
      %v1142 = vadd.f32 0.0, %v1141
      %v1143 = vpop.f32.mrf.mxu0
      %v1144 = vpop.f32.mrf.mxu0
      %1145 = vdwg.mxu0
      %v1146 = vadd.f32 %v1059, %v1099
      %v1147 = vadd.f32 %v1060, %v1101
      %v1148 = vadd.f32 %v1061, %v1140
      %v1149 = vadd.f32 %v1062, %v1142
      %v1150 = vxor.u32 %v1146, 2147483648
      %v1151 = vmul.f32 %v1150, 1.442695
      %v1152 = vpow.pop %v1151
      %v1153 = vadd.f32 %v1152, 1.0
      %v1154 = vrcp.pop %v1153
      %v1155 = vmul.f32 1.0, %v1154
      %v1156 = vxor.u32 %v1147, 2147483648
      %v1157 = vmul.f32 %v1156, 1.442695
      %v1158 = vpow.pop %v1157
      %v1159 = vadd.f32 %v1158, 1.0
      %v1160 = vrcp.pop %v1159
      %v1161 = vmul.f32 1.0, %v1160
      %v1162 = vtanh.pop %v1148
      %v1163 = vxor.u32 %v1149, 2147483648
      %v1164 = vmul.f32 %v1163, 1.442695
      %v1165 = vpow.pop %v1164
      %v1166 = vadd.f32 %v1165, 1.0
      %v1167 = vrcp.pop %v1166
      %v1168 = vmul.f32 1.0, %v1167
      %v1169 = vmul.f32 %v1161, %v1057
      %v1170 = vmul.f32 %v1155, %v1162
      %v1171 = vadd.f32 %v1169, %v1170
      %v1172 = vtanh.pop %v1171
      %v1173 = vmul.f32 %v1168, %v1172
      %1174 = vst [vmem:[#allocation4] sm:$0xff] %v1173
      %1175 = vst [vmem:[#allocation5] sm:$0xff] %v1171
      %s1176 = scalar_lea.vmem [#allocation2], 8
      %1177 = vst [vmem:[%s1176] sm:$0xff] %v1173
      %v1178 = vld [vmem:[#allocation4] sm:$0xff]
      %v1179 = vld [vmem:[#allocation5] sm:$0xff]
      %s1180 = scalar_lea.vmem [#allocation3], 64
      %v1181 = vld [vmem:[%s1180] sm:$0xff]
      %v1182 = vld [vmem:[%s1180 + $0x8] sm:$0xff]
      %v1183 = vld [vmem:[%s1180 + $0x10] sm:$0xff]
      %v1184 = vld [vmem:[%s1180 + $0x18] sm:$0xff]
      %v1185 = vpack.c.bf16 %v1178, %v1178
      %1186 = vmatprep.subr.bf16.mxu0 %v908
      %1187 = vmatpush1.bf16.msra.mxu0 %v907
      %1188 = vmatprep.subr.bf16.mxu0 %v904
      %1189 = vmatpush1.bf16.msra.mxu0 %v903
      %1190 = vmatprep.subr.bf16.mxu0 %v900
      %1191 = vmatpush1.bf16.msra.mxu0 %v899
      %1192 = vmatprep.subr.bf16.mxu0 %v896
      %1193 = vmatpush1.bf16.msra.mxu0 %v895
      %1194 = vmatprep.subr.bf16.mxu0 %v892
      %1195 = vmatpush1.bf16.msra.mxu0 %v891
      %1196 = vmatprep.subr.bf16.mxu0 %v888
      %1197 = vmatpush1.bf16.msra.mxu0 %v887
      %1198 = vmatprep.subr.bf16.mxu0 %v884
      %1199 = vmatpush1.bf16.msra.mxu0 %v883
      %1200 = vmatprep.subr.bf16.mxu0 %v880
      %1201 = vmatpush1.bf16.msra.mxu0 %v879
      %1202 = vmatprep.subr.bf16.mxu0 0
      %1203 = vmatpush2.bf16.msra.mxu0 0
      %1204 = vmatprep.subr.bf16.mxu0 0
      %1205 = vmatpush2.bf16.msra.mxu0 0
      %1206 = vmatprep.subr.bf16.mxu0 0
      %1207 = vmatpush2.bf16.msra.mxu0 0
      %1208 = vmatprep.subr.bf16.mxu0 0
      %1209 = vmatpush2.bf16.msra.mxu0 0
      %1210 = vmatprep.subr.bf16.mxu0 0
      %1211 = vmatpush2.bf16.msra.mxu0 0
      %1212 = vmatprep.subr.bf16.mxu0 0
      %1213 = vmatpush2.bf16.msra.mxu0 0
      %1214 = vmatprep.subr.bf16.mxu0 0
      %1215 = vmatpush2.bf16.msra.mxu0 0
      %1216 = vmatprep.subr.bf16.mxu0 0
      %1217 = vmatpush2.bf16.msra.mxu0 0
      %1218 = vmatprep.mubr.bf16.mxu0 0
      %1219 = vmatmul.mubr.bf16.gmra.mxu0 %v1185
      %v1220 = vpop.f32.mrf.mxu0
      %v1221 = vadd.f32 0.0, %v1220
      %v1222 = vpop.f32.mrf.mxu0
      %v1223 = vadd.f32 0.0, %v1222
      %v1224 = vpop.f32.mrf.mxu0
      %v1225 = vpop.f32.mrf.mxu0
      %1226 = vdwg.mxu0
      %1227 = vmatprep.subr.bf16.mxu0 %v910
      %1228 = vmatpush1.bf16.msra.mxu0 %v909
      %1229 = vmatprep.subr.bf16.mxu0 %v906
      %1230 = vmatpush1.bf16.msra.mxu0 %v905
      %1231 = vmatprep.subr.bf16.mxu0 %v902
      %1232 = vmatpush1.bf16.msra.mxu0 %v901
      %1233 = vmatprep.subr.bf16.mxu0 %v898
      %1234 = vmatpush1.bf16.msra.mxu0 %v897
      %1235 = vmatprep.subr.bf16.mxu0 %v894
      %1236 = vmatpush1.bf16.msra.mxu0 %v893
      %1237 = vmatprep.subr.bf16.mxu0 %v890
      %1238 = vmatpush1.bf16.msra.mxu0 %v889
      %1239 = vmatprep.subr.bf16.mxu0 %v886
      %1240 = vmatpush1.bf16.msra.mxu0 %v885
      %1241 = vmatprep.subr.bf16.mxu0 %v882
      %1242 = vmatpush1.bf16.msra.mxu0 %v881
      %1243 = vmatprep.subr.bf16.mxu0 0
      %1244 = vmatpush2.bf16.msra.mxu0 0
      %1245 = vmatprep.subr.bf16.mxu0 0
      %1246 = vmatpush2.bf16.msra.mxu0 0
      %1247 = vmatprep.subr.bf16.mxu0 0
      %1248 = vmatpush2.bf16.msra.mxu0 0
      %1249 = vmatprep.subr.bf16.mxu0 0
      %1250 = vmatpush2.bf16.msra.mxu0 0
      %1251 = vmatprep.subr.bf16.mxu0 0
      %1252 = vmatpush2.bf16.msra.mxu0 0
      %1253 = vmatprep.subr.bf16.mxu0 0
      %1254 = vmatpush2.bf16.msra.mxu0 0
      %1255 = vmatprep.subr.bf16.mxu0 0
      %1256 = vmatpush2.bf16.msra.mxu0 0
      %1257 = vmatprep.subr.bf16.mxu0 0
      %1258 = vmatpush2.bf16.msra.mxu0 0
      %1259 = vmatprep.mubr.bf16.mxu0 0
      %1260 = vmatmul.mubr.bf16.gmra.mxu0 %v1185
      %v1261 = vpop.f32.mrf.mxu0
      %v1262 = vadd.f32 0.0, %v1261
      %v1263 = vpop.f32.mrf.mxu0
      %v1264 = vadd.f32 0.0, %v1263
      %v1265 = vpop.f32.mrf.mxu0
      %v1266 = vpop.f32.mrf.mxu0
      %1267 = vdwg.mxu0
      %v1268 = vadd.f32 %v1181, %v1221
      %v1269 = vadd.f32 %v1182, %v1223
      %v1270 = vadd.f32 %v1183, %v1262
      %v1271 = vadd.f32 %v1184, %v1264
      %v1272 = vxor.u32 %v1268, 2147483648
      %v1273 = vmul.f32 %v1272, 1.442695
      %v1274 = vpow.pop %v1273
      %v1275 = vadd.f32 %v1274, 1.0
      %v1276 = vrcp.pop %v1275
      %v1277 = vmul.f32 1.0, %v1276
      %v1278 = vxor.u32 %v1269, 2147483648
      %v1279 = vmul.f32 %v1278, 1.442695
      %v1280 = vpow.pop %v1279
      %v1281 = vadd.f32 %v1280, 1.0
      %v1282 = vrcp.pop %v1281
      %v1283 = vmul.f32 1.0, %v1282
      %v1284 = vtanh.pop %v1270
      %v1285 = vxor.u32 %v1271, 2147483648
      %v1286 = vmul.f32 %v1285, 1.442695
      %v1287 = vpow.pop %v1286
      %v1288 = vadd.f32 %v1287, 1.0
      %v1289 = vrcp.pop %v1288
      %v1290 = vmul.f32 1.0, %v1289
      %v1291 = vmul.f32 %v1283, %v1179
      %v1292 = vmul.f32 %v1277, %v1284
      %v1293 = vadd.f32 %v1291, %v1292
      %v1294 = vtanh.pop %v1293
      %v1295 = vmul.f32 %v1290, %v1294
      %1296 = vst [vmem:[#allocation4] sm:$0xff] %v1295
      %1297 = vst [vmem:[#allocation5] sm:$0xff] %v1293
      %s1298 = scalar_lea.vmem [#allocation2], 16
      %1299 = vst [vmem:[%s1298] sm:$0xff] %v1295
      %v1300 = vld [vmem:[#allocation4] sm:$0xff]
      %v1301 = vld [vmem:[#allocation5] sm:$0xff]
      %s1302 = scalar_lea.vmem [#allocation3], 96
      %v1303 = vld [vmem:[%s1302] sm:$0xff]
      %v1304 = vld [vmem:[%s1302 + $0x8] sm:$0xff]
      %v1305 = vld [vmem:[%s1302 + $0x10] sm:$0xff]
      %v1306 = vld [vmem:[%s1302 + $0x18] sm:$0xff]
      %v1307 = vpack.c.bf16 %v1300, %v1300
      %1308 = vmatprep.subr.bf16.mxu0 %v908
      %1309 = vmatpush1.bf16.msra.mxu0 %v907
      %1310 = vmatprep.subr.bf16.mxu0 %v904
      %1311 = vmatpush1.bf16.msra.mxu0 %v903
      %1312 = vmatprep.subr.bf16.mxu0 %v900
      %1313 = vmatpush1.bf16.msra.mxu0 %v899
      %1314 = vmatprep.subr.bf16.mxu0 %v896
      %1315 = vmatpush1.bf16.msra.mxu0 %v895
      %1316 = vmatprep.subr.bf16.mxu0 %v892
      %1317 = vmatpush1.bf16.msra.mxu0 %v891
      %1318 = vmatprep.subr.bf16.mxu0 %v888
      %1319 = vmatpush1.bf16.msra.mxu0 %v887
      %1320 = vmatprep.subr.bf16.mxu0 %v884
      %1321 = vmatpush1.bf16.msra.mxu0 %v883
      %1322 = vmatprep.subr.bf16.mxu0 %v880
      %1323 = vmatpush1.bf16.msra.mxu0 %v879
      %1324 = vmatprep.subr.bf16.mxu0 0
      %1325 = vmatpush2.bf16.msra.mxu0 0
      %1326 = vmatprep.subr.bf16.mxu0 0
      %1327 = vmatpush2.bf16.msra.mxu0 0
      %1328 = vmatprep.subr.bf16.mxu0 0
      %1329 = vmatpush2.bf16.msra.mxu0 0
      %1330 = vmatprep.subr.bf16.mxu0 0
      %1331 = vmatpush2.bf16.msra.mxu0 0
      %1332 = vmatprep.subr.bf16.mxu0 0
      %1333 = vmatpush2.bf16.msra.mxu0 0
      %1334 = vmatprep.subr.bf16.mxu0 0
      %1335 = vmatpush2.bf16.msra.mxu0 0
      %1336 = vmatprep.subr.bf16.mxu0 0
      %1337 = vmatpush2.bf16.msra.mxu0 0
      %1338 = vmatprep.subr.bf16.mxu0 0
      %1339 = vmatpush2.bf16.msra.mxu0 0
      %1340 = vmatprep.mubr.bf16.mxu0 0
      %1341 = vmatmul.mubr.bf16.gmra.mxu0 %v1307
      %v1342 = vpop.f32.mrf.mxu0
      %v1343 = vadd.f32 0.0, %v1342
      %v1344 = vpop.f32.mrf.mxu0
      %v1345 = vadd.f32 0.0, %v1344
      %v1346 = vpop.f32.mrf.mxu0
      %v1347 = vpop.f32.mrf.mxu0
      %1348 = vdwg.mxu0
      %1349 = vmatprep.subr.bf16.mxu0 %v910
      %1350 = vmatpush1.bf16.msra.mxu0 %v909
      %1351 = vmatprep.subr.bf16.mxu0 %v906
      %1352 = vmatpush1.bf16.msra.mxu0 %v905
      %1353 = vmatprep.subr.bf16.mxu0 %v902
      %1354 = vmatpush1.bf16.msra.mxu0 %v901
      %1355 = vmatprep.subr.bf16.mxu0 %v898
      %1356 = vmatpush1.bf16.msra.mxu0 %v897
      %1357 = vmatprep.subr.bf16.mxu0 %v894
      %1358 = vmatpush1.bf16.msra.mxu0 %v893
      %1359 = vmatprep.subr.bf16.mxu0 %v890
      %1360 = vmatpush1.bf16.msra.mxu0 %v889
      %1361 = vmatprep.subr.bf16.mxu0 %v886
      %1362 = vmatpush1.bf16.msra.mxu0 %v885
      %1363 = vmatprep.subr.bf16.mxu0 %v882
      %1364 = vmatpush1.bf16.msra.mxu0 %v881
      %1365 = vmatprep.subr.bf16.mxu0 0
      %1366 = vmatpush2.bf16.msra.mxu0 0
      %1367 = vmatprep.subr.bf16.mxu0 0
      %1368 = vmatpush2.bf16.msra.mxu0 0
      %1369 = vmatprep.subr.bf16.mxu0 0
      %1370 = vmatpush2.bf16.msra.mxu0 0
      %1371 = vmatprep.subr.bf16.mxu0 0
      %1372 = vmatpush2.bf16.msra.mxu0 0
      %1373 = vmatprep.subr.bf16.mxu0 0
      %1374 = vmatpush2.bf16.msra.mxu0 0
      %1375 = vmatprep.subr.bf16.mxu0 0
      %1376 = vmatpush2.bf16.msra.mxu0 0
      %1377 = vmatprep.subr.bf16.mxu0 0
      %1378 = vmatpush2.bf16.msra.mxu0 0
      %1379 = vmatprep.subr.bf16.mxu0 0
      %1380 = vmatpush2.bf16.msra.mxu0 0
      %1381 = vmatprep.mubr.bf16.mxu0 0
      %1382 = vmatmul.mubr.bf16.gmra.mxu0 %v1307
      %v1383 = vpop.f32.mrf.mxu0
      %v1384 = vadd.f32 0.0, %v1383
      %v1385 = vpop.f32.mrf.mxu0
      %v1386 = vadd.f32 0.0, %v1385
      %v1387 = vpop.f32.mrf.mxu0
      %v1388 = vpop.f32.mrf.mxu0
      %1389 = vdwg.mxu0
      %v1390 = vadd.f32 %v1303, %v1343
      %v1391 = vadd.f32 %v1304, %v1345
      %v1392 = vadd.f32 %v1305, %v1384
      %v1393 = vadd.f32 %v1306, %v1386
      %v1394 = vxor.u32 %v1390, 2147483648
      %v1395 = vmul.f32 %v1394, 1.442695
      %v1396 = vpow.pop %v1395
      %v1397 = vadd.f32 %v1396, 1.0
      %v1398 = vrcp.pop %v1397
      %v1399 = vmul.f32 1.0, %v1398
      %v1400 = vxor.u32 %v1391, 2147483648
      %v1401 = vmul.f32 %v1400, 1.442695
      %v1402 = vpow.pop %v1401
      %v1403 = vadd.f32 %v1402, 1.0
      %v1404 = vrcp.pop %v1403
      %v1405 = vmul.f32 1.0, %v1404
      %v1406 = vtanh.pop %v1392
      %v1407 = vxor.u32 %v1393, 2147483648
      %v1408 = vmul.f32 %v1407, 1.442695
      %v1409 = vpow.pop %v1408
      %v1410 = vadd.f32 %v1409, 1.0
      %v1411 = vrcp.pop %v1410
      %v1412 = vmul.f32 1.0, %v1411
      %v1413 = vmul.f32 %v1405, %v1301
      %v1414 = vmul.f32 %v1399, %v1406
      %v1415 = vadd.f32 %v1413, %v1414
      %v1416 = vtanh.pop %v1415
      %v1417 = vmul.f32 %v1412, %v1416
      %1418 = vst [vmem:[#allocation4] sm:$0xff] %v1417
      %1419 = vst [vmem:[#allocation5] sm:$0xff] %v1415
      %s1420 = scalar_lea.vmem [#allocation2], 24
      %1421 = vst [vmem:[%s1420] sm:$0xff] %v1417
      %v1422 = vld [vmem:[#allocation4] sm:$0xff]
      %v1423 = vld [vmem:[#allocation5] sm:$0xff]
      %s1424 = scalar_lea.vmem [#allocation3], 128
      %v1425 = vld [vmem:[%s1424] sm:$0xff]
      %v1426 = vld [vmem:[%s1424 + $0x8] sm:$0xff]
      %v1427 = vld [vmem:[%s1424 + $0x10] sm:$0xff]
      %v1428 = vld [vmem:[%s1424 + $0x18] sm:$0xff]
      %v1429 = vpack.c.bf16 %v1422, %v1422
      %1430 = vmatprep.subr.bf16.mxu0 %v908
      %1431 = vmatpush1.bf16.msra.mxu0 %v907
      %1432 = vmatprep.subr.bf16.mxu0 %v904
      %1433 = vmatpush1.bf16.msra.mxu0 %v903
      %1434 = vmatprep.subr.bf16.mxu0 %v900
      %1435 = vmatpush1.bf16.msra.mxu0 %v899
      %1436 = vmatprep.subr.bf16.mxu0 %v896
      %1437 = vmatpush1.bf16.msra.mxu0 %v895
      %1438 = vmatprep.subr.bf16.mxu0 %v892
      %1439 = vmatpush1.bf16.msra.mxu0 %v891
      %1440 = vmatprep.subr.bf16.mxu0 %v888
      %1441 = vmatpush1.bf16.msra.mxu0 %v887
      %1442 = vmatprep.subr.bf16.mxu0 %v884
      %1443 = vmatpush1.bf16.msra.mxu0 %v883
      %1444 = vmatprep.subr.bf16.mxu0 %v880
      %1445 = vmatpush1.bf16.msra.mxu0 %v879
      %1446 = vmatprep.subr.bf16.mxu0 0
      %1447 = vmatpush2.bf16.msra.mxu0 0
      %1448 = vmatprep.subr.bf16.mxu0 0
      %1449 = vmatpush2.bf16.msra.mxu0 0
      %1450 = vmatprep.subr.bf16.mxu0 0
      %1451 = vmatpush2.bf16.msra.mxu0 0
      %1452 = vmatprep.subr.bf16.mxu0 0
      %1453 = vmatpush2.bf16.msra.mxu0 0
      %1454 = vmatprep.subr.bf16.mxu0 0
      %1455 = vmatpush2.bf16.msra.mxu0 0
      %1456 = vmatprep.subr.bf16.mxu0 0
      %1457 = vmatpush2.bf16.msra.mxu0 0
      %1458 = vmatprep.subr.bf16.mxu0 0
      %1459 = vmatpush2.bf16.msra.mxu0 0
      %1460 = vmatprep.subr.bf16.mxu0 0
      %1461 = vmatpush2.bf16.msra.mxu0 0
      %1462 = vmatprep.mubr.bf16.mxu0 0
      %1463 = vmatmul.mubr.bf16.gmra.mxu0 %v1429
      %v1464 = vpop.f32.mrf.mxu0
      %v1465 = vadd.f32 0.0, %v1464
      %v1466 = vpop.f32.mrf.mxu0
      %v1467 = vadd.f32 0.0, %v1466
      %v1468 = vpop.f32.mrf.mxu0
      %v1469 = vpop.f32.mrf.mxu0
      %1470 = vdwg.mxu0
      %1471 = vmatprep.subr.bf16.mxu0 %v910
      %1472 = vmatpush1.bf16.msra.mxu0 %v909
      %1473 = vmatprep.subr.bf16.mxu0 %v906
      %1474 = vmatpush1.bf16.msra.mxu0 %v905
      %1475 = vmatprep.subr.bf16.mxu0 %v902
      %1476 = vmatpush1.bf16.msra.mxu0 %v901
      %1477 = vmatprep.subr.bf16.mxu0 %v898
      %1478 = vmatpush1.bf16.msra.mxu0 %v897
      %1479 = vmatprep.subr.bf16.mxu0 %v894
      %1480 = vmatpush1.bf16.msra.mxu0 %v893
      %1481 = vmatprep.subr.bf16.mxu0 %v890
      %1482 = vmatpush1.bf16.msra.mxu0 %v889
      %1483 = vmatprep.subr.bf16.mxu0 %v886
      %1484 = vmatpush1.bf16.msra.mxu0 %v885
      %1485 = vmatprep.subr.bf16.mxu0 %v882
      %1486 = vmatpush1.bf16.msra.mxu0 %v881
      %1487 = vmatprep.subr.bf16.mxu0 0
      %1488 = vmatpush2.bf16.msra.mxu0 0
      %1489 = vmatprep.subr.bf16.mxu0 0
      %1490 = vmatpush2.bf16.msra.mxu0 0
      %1491 = vmatprep.subr.bf16.mxu0 0
      %1492 = vmatpush2.bf16.msra.mxu0 0
      %1493 = vmatprep.subr.bf16.mxu0 0
      %1494 = vmatpush2.bf16.msra.mxu0 0
      %1495 = vmatprep.subr.bf16.mxu0 0
      %1496 = vmatpush2.bf16.msra.mxu0 0
      %1497 = vmatprep.subr.bf16.mxu0 0
      %1498 = vmatpush2.bf16.msra.mxu0 0
      %1499 = vmatprep.subr.bf16.mxu0 0
      %1500 = vmatpush2.bf16.msra.mxu0 0
      %1501 = vmatprep.subr.bf16.mxu0 0
      %1502 = vmatpush2.bf16.msra.mxu0 0
      %1503 = vmatprep.mubr.bf16.mxu0 0
      %1504 = vmatmul.mubr.bf16.gmra.mxu0 %v1429
      %v1505 = vpop.f32.mrf.mxu0
      %v1506 = vadd.f32 0.0, %v1505
      %v1507 = vpop.f32.mrf.mxu0
      %v1508 = vadd.f32 0.0, %v1507
      %v1509 = vpop.f32.mrf.mxu0
      %v1510 = vpop.f32.mrf.mxu0
      %1511 = vdwg.mxu0
      %v1512 = vadd.f32 %v1425, %v1465
      %v1513 = vadd.f32 %v1426, %v1467
      %v1514 = vadd.f32 %v1427, %v1506
      %v1515 = vadd.f32 %v1428, %v1508
      %v1516 = vxor.u32 %v1512, 2147483648
      %v1517 = vmul.f32 %v1516, 1.442695
      %v1518 = vpow.pop %v1517
      %v1519 = vadd.f32 %v1518, 1.0
      %v1520 = vrcp.pop %v1519
      %v1521 = vmul.f32 1.0, %v1520
      %v1522 = vxor.u32 %v1513, 2147483648
      %v1523 = vmul.f32 %v1522, 1.442695
      %v1524 = vpow.pop %v1523
      %v1525 = vadd.f32 %v1524, 1.0
      %v1526 = vrcp.pop %v1525
      %v1527 = vmul.f32 1.0, %v1526
      %v1528 = vtanh.pop %v1514
      %v1529 = vxor.u32 %v1515, 2147483648
      %v1530 = vmul.f32 %v1529, 1.442695
      %v1531 = vpow.pop %v1530
      %v1532 = vadd.f32 %v1531, 1.0
      %v1533 = vrcp.pop %v1532
      %v1534 = vmul.f32 1.0, %v1533
      %v1535 = vmul.f32 %v1527, %v1423
      %v1536 = vmul.f32 %v1521, %v1528
      %v1537 = vadd.f32 %v1535, %v1536
      %v1538 = vtanh.pop %v1537
      %v1539 = vmul.f32 %v1534, %v1538
      %1540 = vst [vmem:[#allocation4] sm:$0xff] %v1539
      %1541 = vst [vmem:[#allocation5] sm:$0xff] %v1537
      %s1542 = scalar_lea.vmem [#allocation2], 32
      %1543 = vst [vmem:[%s1542] sm:$0xff] %v1539
      %v1544 = vld [vmem:[#allocation4] sm:$0xff]
      %v1545 = vld [vmem:[#allocation5] sm:$0xff]
      %s1546 = scalar_lea.vmem [#allocation3], 160
      %v1547 = vld [vmem:[%s1546] sm:$0xff]
      %v1548 = vld [vmem:[%s1546 + $0x8] sm:$0xff]
      %v1549 = vld [vmem:[%s1546 + $0x10] sm:$0xff]
      %v1550 = vld [vmem:[%s1546 + $0x18] sm:$0xff]
      %v1551 = vpack.c.bf16 %v1544, %v1544
      %1552 = vmatprep.subr.bf16.mxu0 %v908
      %1553 = vmatpush1.bf16.msra.mxu0 %v907
      %1554 = vmatprep.subr.bf16.mxu0 %v904
      %1555 = vmatpush1.bf16.msra.mxu0 %v903
      %1556 = vmatprep.subr.bf16.mxu0 %v900
      %1557 = vmatpush1.bf16.msra.mxu0 %v899
      %1558 = vmatprep.subr.bf16.mxu0 %v896
      %1559 = vmatpush1.bf16.msra.mxu0 %v895
      %1560 = vmatprep.subr.bf16.mxu0 %v892
      %1561 = vmatpush1.bf16.msra.mxu0 %v891
      %1562 = vmatprep.subr.bf16.mxu0 %v888
      %1563 = vmatpush1.bf16.msra.mxu0 %v887
      %1564 = vmatprep.subr.bf16.mxu0 %v884
      %1565 = vmatpush1.bf16.msra.mxu0 %v883
      %1566 = vmatprep.subr.bf16.mxu0 %v880
      %1567 = vmatpush1.bf16.msra.mxu0 %v879
      %1568 = vmatprep.subr.bf16.mxu0 0
      %1569 = vmatpush2.bf16.msra.mxu0 0
      %1570 = vmatprep.subr.bf16.mxu0 0
      %1571 = vmatpush2.bf16.msra.mxu0 0
      %1572 = vmatprep.subr.bf16.mxu0 0
      %1573 = vmatpush2.bf16.msra.mxu0 0
      %1574 = vmatprep.subr.bf16.mxu0 0
      %1575 = vmatpush2.bf16.msra.mxu0 0
      %1576 = vmatprep.subr.bf16.mxu0 0
      %1577 = vmatpush2.bf16.msra.mxu0 0
      %1578 = vmatprep.subr.bf16.mxu0 0
      %1579 = vmatpush2.bf16.msra.mxu0 0
      %1580 = vmatprep.subr.bf16.mxu0 0
      %1581 = vmatpush2.bf16.msra.mxu0 0
      %1582 = vmatprep.subr.bf16.mxu0 0
      %1583 = vmatpush2.bf16.msra.mxu0 0
      %1584 = vmatprep.mubr.bf16.mxu0 0
      %1585 = vmatmul.mubr.bf16.gmra.mxu0 %v1551
      %v1586 = vpop.f32.mrf.mxu0
      %v1587 = vadd.f32 0.0, %v1586
      %v1588 = vpop.f32.mrf.mxu0
      %v1589 = vadd.f32 0.0, %v1588
      %v1590 = vpop.f32.mrf.mxu0
      %v1591 = vpop.f32.mrf.mxu0
      %1592 = vdwg.mxu0
      %1593 = vmatprep.subr.bf16.mxu0 %v910
      %1594 = vmatpush1.bf16.msra.mxu0 %v909
      %1595 = vmatprep.subr.bf16.mxu0 %v906
      %1596 = vmatpush1.bf16.msra.mxu0 %v905
      %1597 = vmatprep.subr.bf16.mxu0 %v902
      %1598 = vmatpush1.bf16.msra.mxu0 %v901
      %1599 = vmatprep.subr.bf16.mxu0 %v898
      %1600 = vmatpush1.bf16.msra.mxu0 %v897
      %1601 = vmatprep.subr.bf16.mxu0 %v894
      %1602 = vmatpush1.bf16.msra.mxu0 %v893
      %1603 = vmatprep.subr.bf16.mxu0 %v890
      %1604 = vmatpush1.bf16.msra.mxu0 %v889
      %1605 = vmatprep.subr.bf16.mxu0 %v886
      %1606 = vmatpush1.bf16.msra.mxu0 %v885
      %1607 = vmatprep.subr.bf16.mxu0 %v882
      %1608 = vmatpush1.bf16.msra.mxu0 %v881
      %1609 = vmatprep.subr.bf16.mxu0 0
      %1610 = vmatpush2.bf16.msra.mxu0 0
      %1611 = vmatprep.subr.bf16.mxu0 0
      %1612 = vmatpush2.bf16.msra.mxu0 0
      %1613 = vmatprep.subr.bf16.mxu0 0
      %1614 = vmatpush2.bf16.msra.mxu0 0
      %1615 = vmatprep.subr.bf16.mxu0 0
      %1616 = vmatpush2.bf16.msra.mxu0 0
      %1617 = vmatprep.subr.bf16.mxu0 0
      %1618 = vmatpush2.bf16.msra.mxu0 0
      %1619 = vmatprep.subr.bf16.mxu0 0
      %1620 = vmatpush2.bf16.msra.mxu0 0
      %1621 = vmatprep.subr.bf16.mxu0 0
      %1622 = vmatpush2.bf16.msra.mxu0 0
      %1623 = vmatprep.subr.bf16.mxu0 0
      %1624 = vmatpush2.bf16.msra.mxu0 0
      %1625 = vmatprep.mubr.bf16.mxu0 0
      %1626 = vmatmul.mubr.bf16.gmra.mxu0 %v1551
      %v1627 = vpop.f32.mrf.mxu0
      %v1628 = vadd.f32 0.0, %v1627
      %v1629 = vpop.f32.mrf.mxu0
      %v1630 = vadd.f32 0.0, %v1629
      %v1631 = vpop.f32.mrf.mxu0
      %v1632 = vpop.f32.mrf.mxu0
      %1633 = vdwg.mxu0
      %v1634 = vadd.f32 %v1547, %v1587
      %v1635 = vadd.f32 %v1548, %v1589
      %v1636 = vadd.f32 %v1549, %v1628
      %v1637 = vadd.f32 %v1550, %v1630
      %v1638 = vxor.u32 %v1634, 2147483648
      %v1639 = vmul.f32 %v1638, 1.442695
      %v1640 = vpow.pop %v1639
      %v1641 = vadd.f32 %v1640, 1.0
      %v1642 = vrcp.pop %v1641
      %v1643 = vmul.f32 1.0, %v1642
      %v1644 = vxor.u32 %v1635, 2147483648
      %v1645 = vmul.f32 %v1644, 1.442695
      %v1646 = vpow.pop %v1645
      %v1647 = vadd.f32 %v1646, 1.0
      %v1648 = vrcp.pop %v1647
      %v1649 = vmul.f32 1.0, %v1648
      %v1650 = vtanh.pop %v1636
      %v1651 = vxor.u32 %v1637, 2147483648
      %v1652 = vmul.f32 %v1651, 1.442695
      %v1653 = vpow.pop %v1652
      %v1654 = vadd.f32 %v1653, 1.0
      %v1655 = vrcp.pop %v1654
      %v1656 = vmul.f32 1.0, %v1655
      %v1657 = vmul.f32 %v1649, %v1545
      %v1658 = vmul.f32 %v1643, %v1650
      %v1659 = vadd.f32 %v1657, %v1658
      %v1660 = vtanh.pop %v1659
      %v1661 = vmul.f32 %v1656, %v1660
      %1662 = vst [vmem:[#allocation4] sm:$0xff] %v1661
      %1663 = vst [vmem:[#allocation5] sm:$0xff] %v1659
      %s1664 = scalar_lea.vmem [#allocation2], 40
      %1665 = vst [vmem:[%s1664] sm:$0xff] %v1661
      %v1666 = vld [vmem:[#allocation4] sm:$0xff]
      %v1667 = vld [vmem:[#allocation5] sm:$0xff]
      %s1668 = scalar_lea.vmem [#allocation3], 192
      %v1669 = vld [vmem:[%s1668] sm:$0xff]
      %v1670 = vld [vmem:[%s1668 + $0x8] sm:$0xff]
      %v1671 = vld [vmem:[%s1668 + $0x10] sm:$0xff]
      %v1672 = vld [vmem:[%s1668 + $0x18] sm:$0xff]
      %v1673 = vpack.c.bf16 %v1666, %v1666
      %1674 = vmatprep.subr.bf16.mxu0 %v908
      %1675 = vmatpush1.bf16.msra.mxu0 %v907
      %1676 = vmatprep.subr.bf16.mxu0 %v904
      %1677 = vmatpush1.bf16.msra.mxu0 %v903
      %1678 = vmatprep.subr.bf16.mxu0 %v900
      %1679 = vmatpush1.bf16.msra.mxu0 %v899
      %1680 = vmatprep.subr.bf16.mxu0 %v896
      %1681 = vmatpush1.bf16.msra.mxu0 %v895
      %1682 = vmatprep.subr.bf16.mxu0 %v892
      %1683 = vmatpush1.bf16.msra.mxu0 %v891
      %1684 = vmatprep.subr.bf16.mxu0 %v888
      %1685 = vmatpush1.bf16.msra.mxu0 %v887
      %1686 = vmatprep.subr.bf16.mxu0 %v884
      %1687 = vmatpush1.bf16.msra.mxu0 %v883
      %1688 = vmatprep.subr.bf16.mxu0 %v880
      %1689 = vmatpush1.bf16.msra.mxu0 %v879
      %1690 = vmatprep.subr.bf16.mxu0 0
      %1691 = vmatpush2.bf16.msra.mxu0 0
      %1692 = vmatprep.subr.bf16.mxu0 0
      %1693 = vmatpush2.bf16.msra.mxu0 0
      %1694 = vmatprep.subr.bf16.mxu0 0
      %1695 = vmatpush2.bf16.msra.mxu0 0
      %1696 = vmatprep.subr.bf16.mxu0 0
      %1697 = vmatpush2.bf16.msra.mxu0 0
      %1698 = vmatprep.subr.bf16.mxu0 0
      %1699 = vmatpush2.bf16.msra.mxu0 0
      %1700 = vmatprep.subr.bf16.mxu0 0
      %1701 = vmatpush2.bf16.msra.mxu0 0
      %1702 = vmatprep.subr.bf16.mxu0 0
      %1703 = vmatpush2.bf16.msra.mxu0 0
      %1704 = vmatprep.subr.bf16.mxu0 0
      %1705 = vmatpush2.bf16.msra.mxu0 0
      %1706 = vmatprep.mubr.bf16.mxu0 0
      %1707 = vmatmul.mubr.bf16.gmra.mxu0 %v1673
      %v1708 = vpop.f32.mrf.mxu0
      %v1709 = vadd.f32 0.0, %v1708
      %v1710 = vpop.f32.mrf.mxu0
      %v1711 = vadd.f32 0.0, %v1710
      %v1712 = vpop.f32.mrf.mxu0
      %v1713 = vpop.f32.mrf.mxu0
      %1714 = vdwg.mxu0
      %1715 = vmatprep.subr.bf16.mxu0 %v910
      %1716 = vmatpush1.bf16.msra.mxu0 %v909
      %1717 = vmatprep.subr.bf16.mxu0 %v906
      %1718 = vmatpush1.bf16.msra.mxu0 %v905
      %1719 = vmatprep.subr.bf16.mxu0 %v902
      %1720 = vmatpush1.bf16.msra.mxu0 %v901
      %1721 = vmatprep.subr.bf16.mxu0 %v898
      %1722 = vmatpush1.bf16.msra.mxu0 %v897
      %1723 = vmatprep.subr.bf16.mxu0 %v894
      %1724 = vmatpush1.bf16.msra.mxu0 %v893
      %1725 = vmatprep.subr.bf16.mxu0 %v890
      %1726 = vmatpush1.bf16.msra.mxu0 %v889
      %1727 = vmatprep.subr.bf16.mxu0 %v886
      %1728 = vmatpush1.bf16.msra.mxu0 %v885
      %1729 = vmatprep.subr.bf16.mxu0 %v882
      %1730 = vmatpush1.bf16.msra.mxu0 %v881
      %1731 = vmatprep.subr.bf16.mxu0 0
      %1732 = vmatpush2.bf16.msra.mxu0 0
      %1733 = vmatprep.subr.bf16.mxu0 0
      %1734 = vmatpush2.bf16.msra.mxu0 0
      %1735 = vmatprep.subr.bf16.mxu0 0
      %1736 = vmatpush2.bf16.msra.mxu0 0
      %1737 = vmatprep.subr.bf16.mxu0 0
      %1738 = vmatpush2.bf16.msra.mxu0 0
      %1739 = vmatprep.subr.bf16.mxu0 0
      %1740 = vmatpush2.bf16.msra.mxu0 0
      %1741 = vmatprep.subr.bf16.mxu0 0
      %1742 = vmatpush2.bf16.msra.mxu0 0
      %1743 = vmatprep.subr.bf16.mxu0 0
      %1744 = vmatpush2.bf16.msra.mxu0 0
      %1745 = vmatprep.subr.bf16.mxu0 0
      %1746 = vmatpush2.bf16.msra.mxu0 0
      %1747 = vmatprep.mubr.bf16.mxu0 0
      %1748 = vmatmul.mubr.bf16.gmra.mxu0 %v1673
      %v1749 = vpop.f32.mrf.mxu0
      %v1750 = vadd.f32 0.0, %v1749
      %v1751 = vpop.f32.mrf.mxu0
      %v1752 = vadd.f32 0.0, %v1751
      %v1753 = vpop.f32.mrf.mxu0
      %v1754 = vpop.f32.mrf.mxu0
      %1755 = vdwg.mxu0
      %v1756 = vadd.f32 %v1669, %v1709
      %v1757 = vadd.f32 %v1670, %v1711
      %v1758 = vadd.f32 %v1671, %v1750
      %v1759 = vadd.f32 %v1672, %v1752
      %v1760 = vxor.u32 %v1756, 2147483648
      %v1761 = vmul.f32 %v1760, 1.442695
      %v1762 = vpow.pop %v1761
      %v1763 = vadd.f32 %v1762, 1.0
      %v1764 = vrcp.pop %v1763
      %v1765 = vmul.f32 1.0, %v1764
      %v1766 = vxor.u32 %v1757, 2147483648
      %v1767 = vmul.f32 %v1766, 1.442695
      %v1768 = vpow.pop %v1767
      %v1769 = vadd.f32 %v1768, 1.0
      %v1770 = vrcp.pop %v1769
      %v1771 = vmul.f32 1.0, %v1770
      %v1772 = vtanh.pop %v1758
      %v1773 = vxor.u32 %v1759, 2147483648
      %v1774 = vmul.f32 %v1773, 1.442695
      %v1775 = vpow.pop %v1774
      %v1776 = vadd.f32 %v1775, 1.0
      %v1777 = vrcp.pop %v1776
      %v1778 = vmul.f32 1.0, %v1777
      %v1779 = vmul.f32 %v1771, %v1667
      %v1780 = vmul.f32 %v1765, %v1772
      %v1781 = vadd.f32 %v1779, %v1780
      %v1782 = vtanh.pop %v1781
      %v1783 = vmul.f32 %v1778, %v1782
      %1784 = vst [vmem:[#allocation4] sm:$0xff] %v1783
      %1785 = vst [vmem:[#allocation5] sm:$0xff] %v1781
      %s1786 = scalar_lea.vmem [#allocation2], 48
      %1787 = vst [vmem:[%s1786] sm:$0xff] %v1783
      %v1788 = vld [vmem:[#allocation4] sm:$0xff]
      %v1789 = vld [vmem:[#allocation5] sm:$0xff]
      %s1790 = scalar_lea.vmem [#allocation3], 224
      %v1791 = vld [vmem:[%s1790] sm:$0xff]
      %v1792 = vld [vmem:[%s1790 + $0x8] sm:$0xff]
      %v1793 = vld [vmem:[%s1790 + $0x10] sm:$0xff]
      %v1794 = vld [vmem:[%s1790 + $0x18] sm:$0xff]
      %v1795 = vpack.c.bf16 %v1788, %v1788
      %1796 = vmatprep.subr.bf16.mxu0 %v908
      %1797 = vmatpush1.bf16.msra.mxu0 %v907
      %1798 = vmatprep.subr.bf16.mxu0 %v904
      %1799 = vmatpush1.bf16.msra.mxu0 %v903
      %1800 = vmatprep.subr.bf16.mxu0 %v900
      %1801 = vmatpush1.bf16.msra.mxu0 %v899
      %1802 = vmatprep.subr.bf16.mxu0 %v896
      %1803 = vmatpush1.bf16.msra.mxu0 %v895
      %1804 = vmatprep.subr.bf16.mxu0 %v892
      %1805 = vmatpush1.bf16.msra.mxu0 %v891
      %1806 = vmatprep.subr.bf16.mxu0 %v888
      %1807 = vmatpush1.bf16.msra.mxu0 %v887
      %1808 = vmatprep.subr.bf16.mxu0 %v884
      %1809 = vmatpush1.bf16.msra.mxu0 %v883
      %1810 = vmatprep.subr.bf16.mxu0 %v880
      %1811 = vmatpush1.bf16.msra.mxu0 %v879
      %1812 = vmatprep.subr.bf16.mxu0 0
      %1813 = vmatpush2.bf16.msra.mxu0 0
      %1814 = vmatprep.subr.bf16.mxu0 0
      %1815 = vmatpush2.bf16.msra.mxu0 0
      %1816 = vmatprep.subr.bf16.mxu0 0
      %1817 = vmatpush2.bf16.msra.mxu0 0
      %1818 = vmatprep.subr.bf16.mxu0 0
      %1819 = vmatpush2.bf16.msra.mxu0 0
      %1820 = vmatprep.subr.bf16.mxu0 0
      %1821 = vmatpush2.bf16.msra.mxu0 0
      %1822 = vmatprep.subr.bf16.mxu0 0
      %1823 = vmatpush2.bf16.msra.mxu0 0
      %1824 = vmatprep.subr.bf16.mxu0 0
      %1825 = vmatpush2.bf16.msra.mxu0 0
      %1826 = vmatprep.subr.bf16.mxu0 0
      %1827 = vmatpush2.bf16.msra.mxu0 0
      %1828 = vmatprep.mubr.bf16.mxu0 0
      %1829 = vmatmul.mubr.bf16.gmra.mxu0 %v1795
      %v1830 = vpop.f32.mrf.mxu0
      %v1831 = vadd.f32 0.0, %v1830
      %v1832 = vpop.f32.mrf.mxu0
      %v1833 = vadd.f32 0.0, %v1832
      %v1834 = vpop.f32.mrf.mxu0
      %v1835 = vpop.f32.mrf.mxu0
      %1836 = vdwg.mxu0
      %1837 = vmatprep.subr.bf16.mxu0 %v910
      %1838 = vmatpush1.bf16.msra.mxu0 %v909
      %1839 = vmatprep.subr.bf16.mxu0 %v906
      %1840 = vmatpush1.bf16.msra.mxu0 %v905
      %1841 = vmatprep.subr.bf16.mxu0 %v902
      %1842 = vmatpush1.bf16.msra.mxu0 %v901
      %1843 = vmatprep.subr.bf16.mxu0 %v898
      %1844 = vmatpush1.bf16.msra.mxu0 %v897
      %1845 = vmatprep.subr.bf16.mxu0 %v894
      %1846 = vmatpush1.bf16.msra.mxu0 %v893
      %1847 = vmatprep.subr.bf16.mxu0 %v890
      %1848 = vmatpush1.bf16.msra.mxu0 %v889
      %1849 = vmatprep.subr.bf16.mxu0 %v886
      %1850 = vmatpush1.bf16.msra.mxu0 %v885
      %1851 = vmatprep.subr.bf16.mxu0 %v882
      %1852 = vmatpush1.bf16.msra.mxu0 %v881
      %1853 = vmatprep.subr.bf16.mxu0 0
      %1854 = vmatpush2.bf16.msra.mxu0 0
      %1855 = vmatprep.subr.bf16.mxu0 0
      %1856 = vmatpush2.bf16.msra.mxu0 0
      %1857 = vmatprep.subr.bf16.mxu0 0
      %1858 = vmatpush2.bf16.msra.mxu0 0
      %1859 = vmatprep.subr.bf16.mxu0 0
      %1860 = vmatpush2.bf16.msra.mxu0 0
      %1861 = vmatprep.subr.bf16.mxu0 0
      %1862 = vmatpush2.bf16.msra.mxu0 0
      %1863 = vmatprep.subr.bf16.mxu0 0
      %1864 = vmatpush2.bf16.msra.mxu0 0
      %1865 = vmatprep.subr.bf16.mxu0 0
      %1866 = vmatpush2.bf16.msra.mxu0 0
      %1867 = vmatprep.subr.bf16.mxu0 0
      %1868 = vmatpush2.bf16.msra.mxu0 0
      %1869 = vmatprep.mubr.bf16.mxu0 0
      %1870 = vmatmul.mubr.bf16.gmra.mxu0 %v1795
      %v1871 = vpop.f32.mrf.mxu0
      %v1872 = vadd.f32 0.0, %v1871
      %v1873 = vpop.f32.mrf.mxu0
      %v1874 = vadd.f32 0.0, %v1873
      %v1875 = vpop.f32.mrf.mxu0
      %v1876 = vpop.f32.mrf.mxu0
      %1877 = vdwg.mxu0
      %v1878 = vadd.f32 %v1791, %v1831
      %v1879 = vadd.f32 %v1792, %v1833
      %v1880 = vadd.f32 %v1793, %v1872
      %v1881 = vadd.f32 %v1794, %v1874
      %v1882 = vxor.u32 %v1878, 2147483648
      %v1883 = vmul.f32 %v1882, 1.442695
      %v1884 = vpow.pop %v1883
      %v1885 = vadd.f32 %v1884, 1.0
      %v1886 = vrcp.pop %v1885
      %v1887 = vmul.f32 1.0, %v1886
      %v1888 = vxor.u32 %v1879, 2147483648
      %v1889 = vmul.f32 %v1888, 1.442695
      %v1890 = vpow.pop %v1889
      %v1891 = vadd.f32 %v1890, 1.0
      %v1892 = vrcp.pop %v1891
      %v1893 = vmul.f32 1.0, %v1892
      %v1894 = vtanh.pop %v1880
      %v1895 = vxor.u32 %v1881, 2147483648
      %v1896 = vmul.f32 %v1895, 1.442695
      %v1897 = vpow.pop %v1896
      %v1898 = vadd.f32 %v1897, 1.0
      %v1899 = vrcp.pop %v1898
      %v1900 = vmul.f32 1.0, %v1899
      %v1901 = vmul.f32 %v1893, %v1789
      %v1902 = vmul.f32 %v1887, %v1894
      %v1903 = vadd.f32 %v1901, %v1902
      %v1904 = vtanh.pop %v1903
      %v1905 = vmul.f32 %v1900, %v1904
      %1906 = vst [vmem:[#allocation4] sm:$0xff] %v1905
      %1907 = vst [vmem:[#allocation5] sm:$0xff] %v1903
      %s1908 = scalar_lea.vmem [#allocation2], 56
      %1909 = vst [vmem:[%s1908] sm:$0xff] %v1905
      %p1910 = scmp.eq.s32.totalorder %s20, 1
      // Predicated region
      $region45: #{lstm_model_forward.1} parent=35 // pred_check
        %p1911 = pneg %p1910
      $region46: #{lstm_model_forward.1} parent=35 // pred_check_branch
        %1913 = sbr.rel (%p1911) target = $region48
      $region47: #{lstm_model_forward.1} parent=35 // pred_region
        %v1914 = vld [vmem:[#allocation4] sm:$0xff]
        %1915 = vst [vmem:[%s264] sm:$0xff] %v1914
      $region48: #{lstm_model_forward.1} parent=35 // pred_fallthru
        _
      %p1916 = scmp.lt.s32.totalorder %s19, 0
      %s1917 = scalar_select %p1916, %s19, 0
      %s1918 = smul.addr %s1917, 8
      %s1919 = scalar_lea.vmem %s4, %s1918
      // Predicated region
      $region49: #{lstm_model_forward.1} parent=35 // pred_check
        %p1920 = pneg %p149
      $region50: #{lstm_model_forward.1} parent=35 // pred_check_branch
        %1922 = sbr.rel (%p1920) target = $region52
      $region51: #{lstm_model_forward.1} parent=35 // pred_region
        _
      $region52: #{lstm_model_forward.1} parent=35 // pred_fallthru
        _
      // Predicated region
      $region53: #{lstm_model_forward.1} parent=35 // pred_check
        %p1923 = pneg %p149
      $region54: #{lstm_model_forward.1} parent=35 // pred_check_branch
        %1925 = sbr.rel (%p1923) target = $region56
      $region55: #{lstm_model_forward.1} parent=35 // pred_region
        %p1926 = scmp.lt.s32.totalorder %s19, 0
        %s1927 = scalar_select %p1926, %s19, 0
        %s1928 = smul.addr %s1927, 8
        %s1929 = scalar_lea.vmem %s4, %s1928
      $region56: #{lstm_model_forward.1} parent=35 // pred_fallthru
        _
    $region36: #{lstm_model_forward.1} parent=5 // pred_fallthru
      _
    %p1930 = scmp.le.s32.totalorder 2, %s10
    // Predicated region
    $region57: #{lstm_model_forward.1} parent=5 // pred_check
      %p1931 = pneg %p1930
    $region58: #{lstm_model_forward.1} parent=5 // pred_check_branch
      %1933 = sbr.rel (%p1931) target = $region60
    $region59: #{lstm_model_forward.1} parent=5 // pred_region
      %s1934 = ssub.s32 %s10, 2
    $region60: #{lstm_model_forward.1} parent=5 // pred_fallthru
      _
  $region6: #{lstm_model_forward.1} parent=0 // loop_footer
    %s14 = sadd.s32 1, %s10
  $region7: #{lstm_model_forward.1} parent=0 // loop_footer_branch
    %9 = sbr.rel target = $region3
  $region8: #{lstm_model_forward.1} parent=0 // loop_exit
    _

</llo_original>
